<compile_context>
chip_gen: v7x
topology: tpu7x:2x2x1
jax: 0.10.0
libtpu: 0.0.40
codegen_flags: <defaults>
</compile_context>

<pallas_src>
import functools

import jax
import jax.numpy as jnp
from jax.experimental import pallas as pl
from jax.experimental.pallas import tpu as pltpu


# ----------------------------------------------------------------------------
# Kernel
# ----------------------------------------------------------------------------
def _layer_norm(x, g, b, eps=1e-5):
    # PyTorch nn.LayerNorm over last dim, eps=1e-5, affine.
    mu = jnp.mean(x, axis=-1, keepdims=True)
    var = jnp.mean((x - mu) ** 2, axis=-1, keepdims=True)
    return (x - mu) * jax.lax.rsqrt(var + eps) * g + b


def _encoder_kernel(n_heads, emb_scale, kb, approx_recip,
                    maskb_ref, tok_ref, pos_ref,
                    wq_ref, wk_ref, wv_ref, wo_ref, w1_ref, w2_ref, vec_ref,
                    out_ref, x_ref):
    l = pl.program_id(1)
    n_layers = pl.num_programs(1)
    TB, S, H = x_ref.shape
    P = w1_ref.shape[-1]
    head_dim = H // n_heads
    N = TB * S
    num_kb = S // kb

    # Layer 0: fused embedding combine  tok*sqrt(H) + pos  (dropout = identity).
    @pl.when(l == 0)
    def _():
        x_ref[...] = tok_ref[...] * emb_scale + pos_ref[...]

    x = x_ref[...]                 # (TB, S, H) f32 residual stream, VMEM-resident
    mask_bias = maskb_ref[...]     # (TB, 1, S): 0 where attend, -1e10 where pad

    # Packed per-layer vector params: rows = bq,bk,bv,bo,g1,b1,bf1,bf2,g2,b2.
    vec = vec_ref[0]               # (10, Dmax) f32
    bq, bk, bv, bo = vec[0:1, :H], vec[1:2, :H], vec[2:3, :H], vec[3:4, :H]
    g1, b1n = vec[4:5, :H], vec[5:6, :H]
    bf1 = vec[6:7, :P]
    bf2 = vec[7:8, :H]
    g2, b2n = vec[8:9, :H], vec[9:10, :H]

    x2 = x.reshape(N, H)
    xb = x2.astype(jnp.bfloat16)
    inv_scale = 1.0 / float(head_dim) ** 0.5

    # --- QKV projections: bf16 weights straight from HBM, f32 accumulation ---
    q = jnp.dot(xb, wq_ref[0], preferred_element_type=jnp.float32) + bq
    k = jnp.dot(xb, wk_ref[0], preferred_element_type=jnp.float32) + bk
    v = jnp.dot(xb, wv_ref[0], preferred_element_type=jnp.float32) + bv
    q = q * inv_scale              # fold 1/sqrt(head_dim) into Q

    q3 = q.reshape(N, n_heads, head_dim)
    k3 = k.reshape(N, n_heads, head_dim)
    v3 = v.reshape(N, n_heads, head_dim)

    # --- Multi-head self-attention: flash-style online softmax over key blocks
    ctx_rows = []
    for b in range(TB):            # TB is small; attention itself is h-batched
        rows = slice(b * S, (b + 1) * S)
        # one explicit relayout per tensor to head-major (h, S, d)
        qh = jnp.swapaxes(q3[rows], 0, 1).astype(jnp.bfloat16)
        kh = jnp.swapaxes(k3[rows], 0, 1).astype(jnp.bfloat16)
        vh = jnp.swapaxes(v3[rows], 0, 1).astype(jnp.bfloat16)
        mb = mask_bias[b]          # (1, S)

        m_i = jnp.full((n_heads, S, 1), -1e30, jnp.float32)
        l_i = jnp.zeros((n_heads, S, 1), jnp.float32)
        acc = jnp.zeros((n_heads, S, head_dim), jnp.float32)
        for j in range(num_kb):
            cols = slice(j * kb, (j + 1) * kb)
            e = jnp.einsum('hqd,hkd->hqk', qh, kh[:, cols, :],
                           preferred_element_type=jnp.float32)     # (h, S, kb)
            e = e + mb[None, :, cols]                              # additive mask
            m_new = jnp.maximum(m_i, jnp.max(e, axis=-1, keepdims=True))
            alpha = jnp.exp(m_i - m_new)
            p = jnp.exp(e - m_new)
            l_i = alpha * l_i + jnp.sum(p, axis=-1, keepdims=True)
            acc = alpha * acc + jnp.einsum('hqk,hkd->hqd',
                                           p.astype(jnp.bfloat16), vh[:, cols, :],
                                           preferred_element_type=jnp.float32)
            m_i = m_new
        ctx = acc * pl.reciprocal(l_i, approx=approx_recip)        # softmax @ V
        ctx_rows.append(jnp.swapaxes(ctx, 0, 1).reshape(S, H))     # -> (S, h*d)
    ctx_all = ctx_rows[0] if TB == 1 else jnp.concatenate(ctx_rows, axis=0)

    attn_out = jnp.dot(ctx_all.astype(jnp.bfloat16), wo_ref[0],
                       preferred_element_type=jnp.float32) + bo

    # residual + LayerNorm (dropout identity)
    h1 = _layer_norm(x2 + attn_out, g1, b1n)

    # --- Position-wise feed-forward ---
    f = jnp.dot(h1.astype(jnp.bfloat16), w1_ref[0],
                preferred_element_type=jnp.float32) + bf1
    f = jnp.maximum(f, 0.0)                                        # relu
    f = jnp.dot(f.astype(jnp.bfloat16), w2_ref[0],
                preferred_element_type=jnp.float32) + bf2

    h2 = _layer_norm(h1 + f, g2, b2n)

    x_ref[...] = h2.reshape(TB, S, H)        # carry activation to next layer

    @pl.when(l == n_layers - 1)
    def _():
        out_ref[...] = h2.reshape(TB, S, H).astype(out_ref.dtype)


# ----------------------------------------------------------------------------
# Wrapper (pallas_call plumbing)
# ----------------------------------------------------------------------------
def _pick_batch_block(B):
    """Largest divisor of B that still leaves >= 2 grid steps on the batch axis."""
    if B <= 1:
        return 1
    for tb in range(B // 2, 0, -1):
        if B % tb == 0:
            return tb
    return 1


def _pick_key_block(S, cap=512):
    """Largest divisor of S that is <= cap (flash key-block size)."""
    if S <= cap:
        return S
    for kb in range(cap, 0, -1):
        if S % kb == 0:
            return kb
    return S


def _vmem_limit_bytes():
    # Generation-aware: ~50 MiB on v7x (64 MiB physical), ~100 MiB on v5e/v6e.
    cap = None
    try:
        cap = int(getattr(pltpu.get_tpu_info(), "vmem_capacity_bytes", 0)) or None
    except Exception:
        cap = None
    if cap is None:
        return 32 * 1024 * 1024                     # conservative fallback
    return min(int(cap * 0.78), 100 * 1024 * 1024)


def encoder_forward(params, src_tokens, src_mask, n_heads,
                    out_dtype=jnp.float32, approx_recip=True):
    B, S = src_tokens.shape
    H = params["tok_emb"].shape[1]
    L = params["wq"].shape[0]
    P = params["w1"].shape[-1]
    emb_scale = float(H) ** 0.5

    # Glue kept in plain JAX: data-dependent embedding gathers + tiny mask prep.
    # TODO(synk): the embedding row gather has no clean rectangular BlockSpec;
    #             a DMA-gather kernel is possible but not worth it at this size.
    tok_e = params["tok_emb"][src_tokens].astype(jnp.float32)     # (B, S, H)
    pos_e = params["pos_emb"][:S].astype(jnp.float32)             # (S, H)
    mask_bias = (src_mask.astype(jnp.float32) - 1.0) * 1e10       # 0 keep, -1e10 pad

    # bf16 matmul weights (pre-transposed [in, out]) -> half the DMA + VMEM.
    def _bf16(w):
        return w.astype(jnp.bfloat16)
    wq, wk, wv, wo = map(_bf16, (params["wq"], params["wk"],
                                 params["wv"], params["wo"]))
    w1, w2 = _bf16(params["w1"]), _bf16(params["w2"])

    # Pack all per-layer vector params into one (L, 10, Dmax) f32 array.
    Dmax = max(H, P)

    def _pad(a):
        a = a.astype(jnp.float32)
        return jnp.pad(a, ((0, 0), (0, 0), (0, Dmax - a.shape[-1])))

    vec = jnp.concatenate([_pad(params[n]) for n in
                           ("bq", "bk", "bv", "bo", "ln1_g", "ln1_b",
                            "b1", "b2", "ln2_g", "ln2_b")], axis=1)   # (L,10,Dmax)

    TB = _pick_batch_block(B)      # amortize weight DMA across TB sequences
    NB = B // TB
    kb = _pick_key_block(S)        # flash key-block size

    weights = (wq, wk, wv, wo, w1, w2, vec)
    w_specs = [pl.BlockSpec((1,) + w.shape[1:], lambda b, l: (l, 0, 0))
               for w in weights]

    flops = B * L * (8 * S * H * H + 4 * S * S * H + 4 * S * H * P)
    bytes_accessed = (4 * (2 * B * S * H + B * S)                 # acts + mask
                      + NB * L * (2 * (4 * H * H + 2 * H * P)     # bf16 weights
                                  + 4 * 10 * Dmax))               # packed vectors
    cost = pl.CostEstimate(flops=flops,
                           transcendentals=B * L * n_heads * S * S,
                           bytes_accessed=int(bytes_accessed))

    kernel = functools.partial(_encoder_kernel, n_heads, emb_scale, kb,
                               approx_recip)
    return pl.pallas_call(
        kernel,
        out_shape=jax.ShapeDtypeStruct((B, S, H), out_dtype),
        grid_spec=pltpu.PrefetchScalarGridSpec(
            num_scalar_prefetch=0,
            grid=(NB, L),
            in_specs=[pl.BlockSpec((TB, 1, S), lambda b, l: (b, 0, 0)),   # mask
                      pl.BlockSpec((TB, S, H), lambda b, l: (b, 0, 0)),   # tok emb
                      pl.BlockSpec((S, H), lambda b, l: (0, 0))]          # pos emb
                     + w_specs,
            out_specs=pl.BlockSpec((TB, S, H), lambda b, l: (b, 0, 0)),
            scratch_shapes=[pltpu.VMEM((TB, S, H), jnp.float32)],         # residual
        ),
        compiler_params=pltpu.CompilerParams(
            dimension_semantics=("parallel", "arbitrary"),
            vmem_limit_bytes=_vmem_limit_bytes()),
        cost_estimate=cost,
    )(mask_bias, tok_e, pos_e, *weights)


# ----------------------------------------------------------------------------
# Deterministic parameter init (synthetic; not a checkpoint load)
# ----------------------------------------------------------------------------
def init_params(key, vocab, H, n_layers, n_heads, pf_dim, max_length):
    ks = jax.random.split(key, 8)
    L = n_layers
    bf = jnp.bfloat16

    def nrm(k, shape, s=0.05, dtype=jnp.float32):
        return (s * jax.random.normal(k, shape, jnp.float32)).astype(dtype)

    return {
        "tok_emb": nrm(ks[0], (vocab, H), 0.02),
        "pos_emb": nrm(ks[1], (max_length, H), 0.02),
        # per-layer weights stacked on a leading L axis; Linear weights stored
        # pre-transposed as [in, out] and kept as bf16 in HBM.
        "wq": nrm(ks[2], (L, H, H), dtype=bf), "bq": jnp.zeros((L, 1, H), jnp.float32),
        "wk": nrm(ks[3], (L, H, H), dtype=bf), "bk": jnp.zeros((L, 1, H), jnp.float32),
        "wv": nrm(ks[4], (L, H, H), dtype=bf), "bv": jnp.zeros((L, 1, H), jnp.float32),
        "wo": nrm(ks[5], (L, H, H), dtype=bf), "bo": jnp.zeros((L, 1, H), jnp.float32),
        "ln1_g": jnp.ones((L, 1, H), jnp.float32),
        "ln1_b": jnp.zeros((L, 1, H), jnp.float32),
        "w1": nrm(ks[6], (L, H, pf_dim), dtype=bf),
        "b1": jnp.zeros((L, 1, pf_dim), jnp.float32),
        "w2": nrm(ks[7], (L, pf_dim, H), dtype=bf),
        "b2": jnp.zeros((L, 1, H), jnp.float32),
        "ln2_g": jnp.ones((L, 1, H), jnp.float32),
        "ln2_b": jnp.zeros((L, 1, H), jnp.float32),
    }


# ----------------------------------------------------------------------------
if __name__ == "__main__":
    B, S, H = 2, 8, 32
    n_heads, pf_dim = 4, 64
    vocab, n_layers, max_len = 50, 2, 100

    key = jax.random.PRNGKey(0)
    pkey, dkey = jax.random.split(key)
    params = init_params(pkey, vocab, H, n_layers, n_heads, pf_dim, max_len)

    src_tokens = jax.random.randint(dkey, (B, S), 0, vocab)
    # src_mask: (B, 1, S) — 1 = attend, 0 = padding (matches PyTorch's
    # (B,1,1,S) mask broadcast over heads and query positions).
    src_mask = jnp.ones((B, 1, S), jnp.float32).at[1, 0, 6:].set(0.0)

    out = encoder_forward(params, src_tokens, src_mask, n_heads)
    jax.block_until_ready(out)
    assert out.shape == (B, S, H)
    print("KERNEL_OK")
</pallas_src>

<mosaic_0001>
module attributes {stable_mosaic.version = 11 : i64} {
  func.func @_encoder_kernel(%arg0: i32, %arg1: i32, %arg2: memref<1x1x8xf32, #tpu.memory_space<vmem>>, %arg3: memref<1x8x32xf32, #tpu.memory_space<vmem>>, %arg4: memref<8x32xf32, #tpu.memory_space<vmem>>, %arg5: memref<1x32x32xbf16, #tpu.memory_space<vmem>>, %arg6: memref<1x32x32xbf16, #tpu.memory_space<vmem>>, %arg7: memref<1x32x32xbf16, #tpu.memory_space<vmem>>, %arg8: memref<1x32x32xbf16, #tpu.memory_space<vmem>>, %arg9: memref<1x32x64xbf16, #tpu.memory_space<vmem>>, %arg10: memref<1x64x32xbf16, #tpu.memory_space<vmem>>, %arg11: memref<1x10x64xf32, #tpu.memory_space<vmem>>, %arg12: memref<1x8x32xf32, #tpu.memory_space<vmem>>, %arg13: memref<1x8x32xf32, #tpu.memory_space<vmem>>) attributes {dimension_semantics = [#tpu.dimension_semantics<parallel>, #tpu.dimension_semantics<arbitrary>], iteration_bounds = array<i64: 2, 2>, scalar_prefetch = 0 : i64, scratch_operands = 1 : i64, tpu.core_type = #tpu.core_type<tc>, window_params = [{transform_indices = @transform_0, window_bounds = array<i64: 1, 1, 8>}, {transform_indices = @transform_1, window_bounds = array<i64: 1, 8, 32>}, {pipeline_mode = #tpu.pipeline_mode<synchronous>, transform_indices = @transform_2, window_bounds = array<i64: 8, 32>}, {transform_indices = @transform_3, window_bounds = array<i64: 1, 32, 32>}, {transform_indices = @transform_4, window_bounds = array<i64: 1, 32, 32>}, {transform_indices = @transform_5, window_bounds = array<i64: 1, 32, 32>}, {transform_indices = @transform_6, window_bounds = array<i64: 1, 32, 32>}, {transform_indices = @transform_7, window_bounds = array<i64: 1, 32, 64>}, {transform_indices = @transform_8, window_bounds = array<i64: 1, 64, 32>}, {transform_indices = @transform_9, window_bounds = array<i64: 1, 10, 64>}, {transform_indices = @transform_10, window_bounds = array<i64: 1, 8, 32>}]} {
    %c0_i32 = arith.constant 0 : i32
    %0 = arith.cmpi eq, %arg1, %c0_i32 : i32
    %1 = arith.extui %0 : i1 to i32
    %c0_i32_0 = arith.constant 0 : i32
    %2 = arith.cmpi ne, %1, %c0_i32_0 : i32
    scf.if %2 {
      %c0_55 = arith.constant 0 : index
      %c0_56 = arith.constant 0 : index
      %c0_57 = arith.constant 0 : index
      %146 = vector.load %arg3[%c0_55, %c0_56, %c0_57] : memref<1x8x32xf32, #tpu.memory_space<vmem>>, vector<1x8x32xf32>
      %cst_58 = arith.constant 5.65685415 : f32
      %147 = vector.broadcast %cst_58 : f32 to vector<1x8x32xf32>
      %148 = arith.mulf %146, %147 : vector<1x8x32xf32>
      %c0_59 = arith.constant 0 : index
      %c0_60 = arith.constant 0 : index
      %149 = vector.load %arg4[%c0_59, %c0_60] : memref<8x32xf32, #tpu.memory_space<vmem>>, vector<8x32xf32>
      %150 = vector.shape_cast %149 : vector<8x32xf32> to vector<1x8x32xf32>
      %151 = arith.addf %148, %150 : vector<1x8x32xf32>
      %c0_61 = arith.constant 0 : index
      %c0_62 = arith.constant 0 : index
      %c0_63 = arith.constant 0 : index
      %152 = vector.load %arg13[%c0_61, %c0_62, %c0_63] : memref<1x8x32xf32, #tpu.memory_space<vmem>>, vector<1x8x32xf32>
      tpu.vector_store %arg13[%c0_61, %c0_62, %c0_63], %151 {strides = array<i32>} : memref<1x8x32xf32, #tpu.memory_space<vmem>>, vector<1x8x32xf32>,
    } else {
    }
    %c0 = arith.constant 0 : index
    %c0_1 = arith.constant 0 : index
    %c0_2 = arith.constant 0 : index
    %3 = vector.load %arg13[%c0, %c0_1, %c0_2] : memref<1x8x32xf32, #tpu.memory_space<vmem>>, vector<1x8x32xf32>
    %c0_3 = arith.constant 0 : index
    %c0_4 = arith.constant 0 : index
    %c0_5 = arith.constant 0 : index
    %4 = vector.load %arg2[%c0_3, %c0_4, %c0_5] : memref<1x1x8xf32, #tpu.memory_space<vmem>>, vector<1x1x8xf32>
    %c0_6 = arith.constant 0 : index
    %c0_7 = arith.constant 0 : index
    %c0_8 = arith.constant 0 : index
    %5 = vector.load %arg11[%c0_6, %c0_7, %c0_8] : memref<1x10x64xf32, #tpu.memory_space<vmem>>, vector<1x10x64xf32>
    %6 = vector.shape_cast %5 : vector<1x10x64xf32> to vector<10x64xf32>
    %7 = vector.extract_strided_slice %6 {offsets = [0, 0], sizes = [1, 32], strides = [1, 1]} : vector<10x64xf32> to vector<1x32xf32>
    %8 = vector.extract_strided_slice %6 {offsets = [1, 0], sizes = [1, 32], strides = [1, 1]} : vector<10x64xf32> to vector<1x32xf32>
    %9 = vector.extract_strided_slice %6 {offsets = [2, 0], sizes = [1, 32], strides = [1, 1]} : vector<10x64xf32> to vector<1x32xf32>
    %10 = vector.extract_strided_slice %6 {offsets = [3, 0], sizes = [1, 32], strides = [1, 1]} : vector<10x64xf32> to vector<1x32xf32>
    %11 = vector.extract_strided_slice %6 {offsets = [4, 0], sizes = [1, 32], strides = [1, 1]} : vector<10x64xf32> to vector<1x32xf32>
    %12 = vector.extract_strided_slice %6 {offsets = [5, 0], sizes = [1, 32], strides = [1, 1]} : vector<10x64xf32> to vector<1x32xf32>
    %13 = vector.extract_strided_slice %6 {offsets = [6, 0], sizes = [1, 64], strides = [1, 1]} : vector<10x64xf32> to vector<1x64xf32>
    %14 = vector.extract_strided_slice %6 {offsets = [7, 0], sizes = [1, 32], strides = [1, 1]} : vector<10x64xf32> to vector<1x32xf32>
    %15 = vector.extract_strided_slice %6 {offsets = [8, 0], sizes = [1, 32], strides = [1, 1]} : vector<10x64xf32> to vector<1x32xf32>
    %16 = vector.extract_strided_slice %6 {offsets = [9, 0], sizes = [1, 32], strides = [1, 1]} : vector<10x64xf32> to vector<1x32xf32>
    %17 = vector.shape_cast %3 : vector<1x8x32xf32> to vector<8x32xf32>
    %18 = arith.truncf %17 : vector<8x32xf32> to vector<8x32xbf16>
    %c0_9 = arith.constant 0 : index
    %c0_10 = arith.constant 0 : index
    %c0_11 = arith.constant 0 : index
    %19 = vector.load %arg5[%c0_9, %c0_10, %c0_11] : memref<1x32x32xbf16, #tpu.memory_space<vmem>>, vector<1x32x32xbf16>
    %20 = vector.shape_cast %19 : vector<1x32x32xbf16> to vector<32x32xbf16>
    %cst = arith.constant dense<0.000000e+00> : vector<8x32xf32>
    %21 = tpu.matmul %18, %20, %cst {dimension_numbers = #tpu.dot_dimension_numbers<[1], [0], [0], [1], [0, 0, 1, 1], [], []>} : vector<8x32xbf16>, vector<32x32xbf16>, vector<8x32xf32> -> vector<8x32xf32>
    %22 = vector.broadcast %7 : vector<1x32xf32> to vector<8x32xf32>
    %23 = arith.addf %21, %22 : vector<8x32xf32>
    %c0_12 = arith.constant 0 : index
    %c0_13 = arith.constant 0 : index
    %c0_14 = arith.constant 0 : index
    %24 = vector.load %arg6[%c0_12, %c0_13, %c0_14] : memref<1x32x32xbf16, #tpu.memory_space<vmem>>, vector<1x32x32xbf16>
    %25 = vector.shape_cast %24 : vector<1x32x32xbf16> to vector<32x32xbf16>
    %cst_15 = arith.constant dense<0.000000e+00> : vector<8x32xf32>
    %26 = tpu.matmul %18, %25, %cst_15 {dimension_numbers = #tpu.dot_dimension_numbers<[1], [0], [0], [1], [0, 0, 1, 1], [], []>} : vector<8x32xbf16>, vector<32x32xbf16>, vector<8x32xf32> -> vector<8x32xf32>
    %27 = vector.broadcast %8 : vector<1x32xf32> to vector<8x32xf32>
    %28 = arith.addf %26, %27 : vector<8x32xf32>
    %c0_16 = arith.constant 0 : index
    %c0_17 = arith.constant 0 : index
    %c0_18 = arith.constant 0 : index
    %29 = vector.load %arg7[%c0_16, %c0_17, %c0_18] : memref<1x32x32xbf16, #tpu.memory_space<vmem>>, vector<1x32x32xbf16>
    %30 = vector.shape_cast %29 : vector<1x32x32xbf16> to vector<32x32xbf16>
    %cst_19 = arith.constant dense<0.000000e+00> : vector<8x32xf32>
    %31 = tpu.matmul %18, %30, %cst_19 {dimension_numbers = #tpu.dot_dimension_numbers<[1], [0], [0], [1], [0, 0, 1, 1], [], []>} : vector<8x32xbf16>, vector<32x32xbf16>, vector<8x32xf32> -> vector<8x32xf32>
    %32 = vector.broadcast %9 : vector<1x32xf32> to vector<8x32xf32>
    %33 = arith.addf %31, %32 : vector<8x32xf32>
    %cst_20 = arith.constant 0.353553385 : f32
    %34 = vector.broadcast %cst_20 : f32 to vector<8x32xf32>
    %35 = arith.mulf %23, %34 : vector<8x32xf32>
    %36 = vector.shape_cast %35 : vector<8x32xf32> to vector<8x4x8xf32>
    %37 = vector.shape_cast %28 : vector<8x32xf32> to vector<8x4x8xf32>
    %38 = vector.shape_cast %33 : vector<8x32xf32> to vector<8x4x8xf32>
    %39 = tpu.transpose %36, [1, 0, 2] : vector<8x4x8xf32> -> vector<4x8x8xf32>
    %40 = arith.truncf %39 : vector<4x8x8xf32> to vector<4x8x8xbf16>
    %41 = tpu.transpose %37, [1, 0, 2] : vector<8x4x8xf32> -> vector<4x8x8xf32>
    %42 = arith.truncf %41 : vector<4x8x8xf32> to vector<4x8x8xbf16>
    %43 = tpu.transpose %38, [1, 0, 2] : vector<8x4x8xf32> -> vector<4x8x8xf32>
    %44 = arith.truncf %43 : vector<4x8x8xf32> to vector<4x8x8xbf16>
    %45 = vector.shape_cast %4 : vector<1x1x8xf32> to vector<1x8xf32>
    %cst_21 = arith.constant -1.000000e+30 : f32
    %46 = vector.broadcast %cst_21 : f32 to vector<4x8x1xf32>
    %cst_22 = arith.constant 0.000000e+00 : f32
    %47 = vector.broadcast %cst_22 : f32 to vector<4x8x1xf32>
    %cst_23 = arith.constant 0.000000e+00 : f32
    %48 = vector.broadcast %cst_23 : f32 to vector<4x8x8xf32>
    "tpu.trace_start"() <{level = 10 : i32, message = "hqd,hkd->hqk"}> : () -> ()
    %cst_24 = arith.constant dense<0.000000e+00> : vector<4x8x8xf32>
    %49 = tpu.matmul %40, %42, %cst_24 {dimension_numbers = #tpu.dot_dimension_numbers<[2], [2], [1], [1], [0, 0, 0, 1, 1, 1], [0], [0]>} : vector<4x8x8xbf16>, vector<4x8x8xbf16>, vector<4x8x8xf32> -> vector<4x8x8xf32>
    "tpu.trace_stop"() : () -> ()
    %50 = vector.shape_cast %45 : vector<1x8xf32> to vector<1x1x8xf32>
    %51 = vector.broadcast %50 : vector<1x1x8xf32> to vector<4x8x8xf32>
    %52 = arith.addf %49, %51 : vector<4x8x8xf32>
    %cst_25 = arith.constant dense<0xFF800000> : vector<4x8xf32>
    %53 = vector.multi_reduction <maximumf>, %52, %cst_25 [2] : vector<4x8x8xf32> to vector<4x8xf32>
    %54 = vector.shape_cast %53 : vector<4x8xf32> to vector<4x8x1xf32>
    %55 = arith.maximumf %46, %54 : vector<4x8x1xf32>
    %56 = arith.subf %46, %55 : vector<4x8x1xf32>
    %57 = math.exp %56 : vector<4x8x1xf32>
    %58 = vector.broadcast %55 : vector<4x8x1xf32> to vector<4x8x8xf32>
    %59 = arith.subf %52, %58 : vector<4x8x8xf32>
    %60 = math.exp %59 : vector<4x8x8xf32>
    %61 = arith.mulf %57, %47 : vector<4x8x1xf32>
    %cst_26 = arith.constant dense<0.000000e+00> : vector<4x8xf32>
    %62 = vector.multi_reduction <add>, %60, %cst_26 [2] : vector<4x8x8xf32> to vector<4x8xf32>
    %63 = vector.shape_cast %62 : vector<4x8xf32> to vector<4x8x1xf32>
    %64 = arith.addf %61, %63 : vector<4x8x1xf32>
    %65 = vector.broadcast %57 : vector<4x8x1xf32> to vector<4x8x8xf32>
    %66 = arith.mulf %65, %48 : vector<4x8x8xf32>
    %67 = arith.truncf %60 : vector<4x8x8xf32> to vector<4x8x8xbf16>
    "tpu.trace_start"() <{level = 10 : i32, message = "hqk,hkd->hqd"}> : () -> ()
    %cst_27 = arith.constant dense<0.000000e+00> : vector<4x8x8xf32>
    %68 = tpu.matmul %67, %44, %cst_27 {dimension_numbers = #tpu.dot_dimension_numbers<[2], [1], [1], [2], [0, 0, 0, 1, 1, 2], [0], [0]>} : vector<4x8x8xbf16>, vector<4x8x8xbf16>, vector<4x8x8xf32> -> vector<4x8x8xf32>
    "tpu.trace_stop"() : () -> ()
    %69 = arith.addf %66, %68 : vector<4x8x8xf32>
    %70 = tpu.reciprocal %64 {approx = true} : vector<4x8x1xf32> -> vector<4x8x1xf32>
    %71 = vector.broadcast %70 : vector<4x8x1xf32> to vector<4x8x8xf32>
    %72 = arith.mulf %69, %71 : vector<4x8x8xf32>
    %73 = tpu.transpose %72, [1, 0, 2] : vector<4x8x8xf32> -> vector<8x4x8xf32>
    %74 = vector.shape_cast %73 : vector<8x4x8xf32> to vector<8x32xf32>
    %75 = arith.truncf %74 : vector<8x32xf32> to vector<8x32xbf16>
    %c0_28 = arith.constant 0 : index
    %c0_29 = arith.constant 0 : index
    %c0_30 = arith.constant 0 : index
    %76 = vector.load %arg8[%c0_28, %c0_29, %c0_30] : memref<1x32x32xbf16, #tpu.memory_space<vmem>>, vector<1x32x32xbf16>
    %77 = vector.shape_cast %76 : vector<1x32x32xbf16> to vector<32x32xbf16>
    %cst_31 = arith.constant dense<0.000000e+00> : vector<8x32xf32>
    %78 = tpu.matmul %75, %77, %cst_31 {dimension_numbers = #tpu.dot_dimension_numbers<[1], [0], [0], [1], [0, 0, 1, 1], [], []>} : vector<8x32xbf16>, vector<32x32xbf16>, vector<8x32xf32> -> vector<8x32xf32>
    %79 = vector.broadcast %10 : vector<1x32xf32> to vector<8x32xf32>
    %80 = arith.addf %78, %79 : vector<8x32xf32>
    %81 = arith.addf %17, %80 : vector<8x32xf32>
    %cst_32 = arith.constant dense<0.000000e+00> : vector<8xf32>
    %82 = vector.multi_reduction <add>, %81, %cst_32 [1] : vector<8x32xf32> to vector<8xf32>
    %83 = vector.shape_cast %82 : vector<8xf32> to vector<8x1xf32>
    %cst_33 = arith.constant 3.200000e+01 : f32
    %84 = vector.broadcast %cst_33 : f32 to vector<8x1xf32>
    %85 = arith.divf %83, %84 : vector<8x1xf32>
    %86 = vector.broadcast %85 : vector<8x1xf32> to vector<8x32xf32>
    %87 = arith.subf %81, %86 : vector<8x32xf32>
    %88 = arith.mulf %87, %87 : vector<8x32xf32>
    %cst_34 = arith.constant dense<0.000000e+00> : vector<8xf32>
    %89 = vector.multi_reduction <add>, %88, %cst_34 [1] : vector<8x32xf32> to vector<8xf32>
    %90 = vector.shape_cast %89 : vector<8xf32> to vector<8x1xf32>
    %cst_35 = arith.constant 3.200000e+01 : f32
    %91 = vector.broadcast %cst_35 : f32 to vector<8x1xf32>
    %92 = arith.divf %90, %91 : vector<8x1xf32>
    %93 = vector.broadcast %85 : vector<8x1xf32> to vector<8x32xf32>
    %94 = arith.subf %81, %93 : vector<8x32xf32>
    %cst_36 = arith.constant 9.99999974E-6 : f32
    %95 = vector.broadcast %cst_36 : f32 to vector<8x1xf32>
    %96 = arith.addf %92, %95 : vector<8x1xf32>
    %97 = math.rsqrt %96 : vector<8x1xf32>
    %98 = vector.broadcast %97 : vector<8x1xf32> to vector<8x32xf32>
    %99 = arith.mulf %94, %98 : vector<8x32xf32>
    %100 = vector.broadcast %11 : vector<1x32xf32> to vector<8x32xf32>
    %101 = arith.mulf %99, %100 : vector<8x32xf32>
    %102 = vector.broadcast %12 : vector<1x32xf32> to vector<8x32xf32>
    %103 = arith.addf %101, %102 : vector<8x32xf32>
    %104 = arith.truncf %103 : vector<8x32xf32> to vector<8x32xbf16>
    %c0_37 = arith.constant 0 : index
    %c0_38 = arith.constant 0 : index
    %c0_39 = arith.constant 0 : index
    %105 = vector.load %arg9[%c0_37, %c0_38, %c0_39] : memref<1x32x64xbf16, #tpu.memory_space<vmem>>, vector<1x32x64xbf16>
    %106 = vector.shape_cast %105 : vector<1x32x64xbf16> to vector<32x64xbf16>
    %cst_40 = arith.constant dense<0.000000e+00> : vector<8x64xf32>
    %107 = tpu.matmul %104, %106, %cst_40 {dimension_numbers = #tpu.dot_dimension_numbers<[1], [0], [0], [1], [0, 0, 1, 1], [], []>} : vector<8x32xbf16>, vector<32x64xbf16>, vector<8x64xf32> -> vector<8x64xf32>
    %108 = vector.broadcast %13 : vector<1x64xf32> to vector<8x64xf32>
    %109 = arith.addf %107, %108 : vector<8x64xf32>
    %cst_41 = arith.constant 0.000000e+00 : f32
    %110 = vector.broadcast %cst_41 : f32 to vector<8x64xf32>
    %111 = arith.maximumf %109, %110 : vector<8x64xf32>
    %112 = arith.truncf %111 : vector<8x64xf32> to vector<8x64xbf16>
    %c0_42 = arith.constant 0 : index
    %c0_43 = arith.constant 0 : index
    %c0_44 = arith.constant 0 : index
    %113 = vector.load %arg10[%c0_42, %c0_43, %c0_44] : memref<1x64x32xbf16, #tpu.memory_space<vmem>>, vector<1x64x32xbf16>
    %114 = vector.shape_cast %113 : vector<1x64x32xbf16> to vector<64x32xbf16>
    %cst_45 = arith.constant dense<0.000000e+00> : vector<8x32xf32>
    %115 = tpu.matmul %112, %114, %cst_45 {dimension_numbers = #tpu.dot_dimension_numbers<[1], [0], [0], [1], [0, 0, 1, 1], [], []>} : vector<8x64xbf16>, vector<64x32xbf16>, vector<8x32xf32> -> vector<8x32xf32>
    %116 = vector.broadcast %14 : vector<1x32xf32> to vector<8x32xf32>
    %117 = arith.addf %115, %116 : vector<8x32xf32>
    %118 = arith.addf %103, %117 : vector<8x32xf32>
    %cst_46 = arith.constant dense<0.000000e+00> : vector<8xf32>
    %119 = vector.multi_reduction <add>, %118, %cst_46 [1] : vector<8x32xf32> to vector<8xf32>
    %120 = vector.shape_cast %119 : vector<8xf32> to vector<8x1xf32>
    %cst_47 = arith.constant 3.200000e+01 : f32
    %121 = vector.broadcast %cst_47 : f32 to vector<8x1xf32>
    %122 = arith.divf %120, %121 : vector<8x1xf32>
    %123 = vector.broadcast %122 : vector<8x1xf32> to vector<8x32xf32>
    %124 = arith.subf %118, %123 : vector<8x32xf32>
    %125 = arith.mulf %124, %124 : vector<8x32xf32>
    %cst_48 = arith.constant dense<0.000000e+00> : vector<8xf32>
    %126 = vector.multi_reduction <add>, %125, %cst_48 [1] : vector<8x32xf32> to vector<8xf32>
    %127 = vector.shape_cast %126 : vector<8xf32> to vector<8x1xf32>
    %cst_49 = arith.constant 3.200000e+01 : f32
    %128 = vector.broadcast %cst_49 : f32 to vector<8x1xf32>
    %129 = arith.divf %127, %128 : vector<8x1xf32>
    %130 = vector.broadcast %122 : vector<8x1xf32> to vector<8x32xf32>
    %131 = arith.subf %118, %130 : vector<8x32xf32>
    %cst_50 = arith.constant 9.99999974E-6 : f32
    %132 = vector.broadcast %cst_50 : f32 to vector<8x1xf32>
    %133 = arith.addf %129, %132 : vector<8x1xf32>
    %134 = math.rsqrt %133 : vector<8x1xf32>
    %135 = vector.broadcast %134 : vector<8x1xf32> to vector<8x32xf32>
    %136 = arith.mulf %131, %135 : vector<8x32xf32>
    %137 = vector.broadcast %15 : vector<1x32xf32> to vector<8x32xf32>
    %138 = arith.mulf %136, %137 : vector<8x32xf32>
    %139 = vector.broadcast %16 : vector<1x32xf32> to vector<8x32xf32>
    %140 = arith.addf %138, %139 : vector<8x32xf32>
    %141 = vector.shape_cast %140 : vector<8x32xf32> to vector<1x8x32xf32>
    %c0_51 = arith.constant 0 : index
    %c0_52 = arith.constant 0 : index
    %c0_53 = arith.constant 0 : index
    %142 = vector.load %arg13[%c0_51, %c0_52, %c0_53] : memref<1x8x32xf32, #tpu.memory_space<vmem>>, vector<1x8x32xf32>
    tpu.vector_store %arg13[%c0_51, %c0_52, %c0_53], %141 {strides = array<i32>} : memref<1x8x32xf32, #tpu.memory_space<vmem>>, vector<1x8x32xf32>,
    %c1_i32 = arith.constant 1 : i32
    %143 = arith.cmpi eq, %arg1, %c1_i32 : i32
    %144 = arith.extui %143 : i1 to i32
    %c0_i32_54 = arith.constant 0 : i32
    %145 = arith.cmpi ne, %144, %c0_i32_54 : i32
    scf.if %145 {
      %146 = vector.shape_cast %140 : vector<8x32xf32> to vector<1x8x32xf32>
      %c0_55 = arith.constant 0 : index
      %c0_56 = arith.constant 0 : index
      %c0_57 = arith.constant 0 : index
      %147 = vector.load %arg12[%c0_55, %c0_56, %c0_57] : memref<1x8x32xf32, #tpu.memory_space<vmem>>, vector<1x8x32xf32>
      tpu.vector_store %arg12[%c0_55, %c0_56, %c0_57], %146 {strides = array<i32>} : memref<1x8x32xf32, #tpu.memory_space<vmem>>, vector<1x8x32xf32>,
    } else {
    }
    return
  }
  func.func @transform_0(%arg0: i32, %arg1: i32) -> (i32, i32, i32) {
    %c0_i32 = arith.constant 0 : i32
    %c0_i32_0 = arith.constant 0 : i32
    %c0_i32_1 = arith.constant 0 : i32
    return %arg0, %c0_i32, %c0_i32_0 : i32, i32, i32
  }
  func.func @transform_1(%arg0: i32, %arg1: i32) -> (i32, i32, i32) {
    %c0_i32 = arith.constant 0 : i32
    %c0_i32_0 = arith.constant 0 : i32
    %c0_i32_1 = arith.constant 0 : i32
    return %arg0, %c0_i32, %c0_i32_0 : i32, i32, i32
  }
  func.func @transform_2(%arg0: i32, %arg1: i32) -> (i32, i32) {
    %c0_i32 = arith.constant 0 : i32
    %c0_i32_0 = arith.constant 0 : i32
    %c0_i32_1 = arith.constant 0 : i32
    return %c0_i32, %c0_i32_0 : i32, i32
  }
  func.func @transform_3(%arg0: i32, %arg1: i32) -> (i32, i32, i32) {
    %c0_i32 = arith.constant 0 : i32
    %c0_i32_0 = arith.constant 0 : i32
    %c0_i32_1 = arith.constant 0 : i32
    return %arg1, %c0_i32, %c0_i32_0 : i32, i32, i32
  }
  func.func @transform_4(%arg0: i32, %arg1: i32) -> (i32, i32, i32) {
    %c0_i32 = arith.constant 0 : i32
    %c0_i32_0 = arith.constant 0 : i32
    %c0_i32_1 = arith.constant 0 : i32
    return %arg1, %c0_i32, %c0_i32_0 : i32, i32, i32
  }
  func.func @transform_5(%arg0: i32, %arg1: i32) -> (i32, i32, i32) {
    %c0_i32 = arith.constant 0 : i32
    %c0_i32_0 = arith.constant 0 : i32
    %c0_i32_1 = arith.constant 0 : i32
    return %arg1, %c0_i32, %c0_i32_0 : i32, i32, i32
  }
  func.func @transform_6(%arg0: i32, %arg1: i32) -> (i32, i32, i32) {
    %c0_i32 = arith.constant 0 : i32
    %c0_i32_0 = arith.constant 0 : i32
    %c0_i32_1 = arith.constant 0 : i32
    return %arg1, %c0_i32, %c0_i32_0 : i32, i32, i32
  }
  func.func @transform_7(%arg0: i32, %arg1: i32) -> (i32, i32, i32) {
    %c0_i32 = arith.constant 0 : i32
    %c0_i32_0 = arith.constant 0 : i32
    %c0_i32_1 = arith.constant 0 : i32
    return %arg1, %c0_i32, %c0_i32_0 : i32, i32, i32
  }
  func.func @transform_8(%arg0: i32, %arg1: i32) -> (i32, i32, i32) {
    %c0_i32 = arith.constant 0 : i32
    %c0_i32_0 = arith.constant 0 : i32
    %c0_i32_1 = arith.constant 0 : i32
    return %arg1, %c0_i32, %c0_i32_0 : i32, i32, i32
  }
  func.func @transform_9(%arg0: i32, %arg1: i32) -> (i32, i32, i32) {
    %c0_i32 = arith.constant 0 : i32
    %c0_i32_0 = arith.constant 0 : i32
    %c0_i32_1 = arith.constant 0 : i32
    return %arg1, %c0_i32, %c0_i32_0 : i32, i32, i32
  }
  func.func @transform_10(%arg0: i32, %arg1: i32) -> (i32, i32, i32) {
    %c0_i32 = arith.constant 0 : i32
    %c0_i32_0 = arith.constant 0 : i32
    %c0_i32_1 = arith.constant 0 : i32
    return %arg0, %c0_i32, %c0_i32_0 : i32, i32, i32
  }
}

</mosaic_0001>

<llo_original>
// kernel: tpu_custom_call.1
$region0: #{tpu_custom_call.1}
  #allocation0 [shape = 'u32[]', space=smem, size = 0x4, offset = 0x4, fixed_abs, tag = 'smem constant byte address 0x4 - core index']
  #allocation1 [shape = 'u32[144,128]{1,0:T(1,128)}', space=vmem, size = 0x12000, scoped, tag = 'internal scratch']
  #allocation2 [shape = 'f32[1,8,32]{2,1,0:T(8,128)}', space=vmem, size = 0x1000, scoped, tag = 'scratch operand']
  %s0 = inlined_call_operand.vmem [shape: f32[2,1,8], index: 0, kind: input, shape index: {}]
  %s1 = inlined_call_operand.hbm [shape: f32[2,8,32], index: 1, kind: input, shape index: {}]
  %s2 = inlined_call_operand.hbm [shape: f32[8,32], index: 2, kind: input, shape index: {}]
  %s3 = inlined_call_operand.vmem [shape: bf16[2,32,32], index: 3, kind: input, shape index: {}]
  %s4 = inlined_call_operand.vmem [shape: bf16[2,32,32], index: 4, kind: input, shape index: {}]
  %s5 = inlined_call_operand.vmem [shape: bf16[2,32,32], index: 5, kind: input, shape index: {}]
  %s6 = inlined_call_operand.vmem [shape: bf16[2,32,32], index: 6, kind: input, shape index: {}]
  %s7 = inlined_call_operand.hbm [shape: bf16[2,32,64], index: 7, kind: input, shape index: {}]
  %s8 = inlined_call_operand.vmem [shape: bf16[2,64,32], index: 8, kind: input, shape index: {}]
  %s9 = inlined_call_operand.vmem [shape: f32[2,10,64], index: 9, kind: input, shape index: {}]
  %s10 = inlined_call_operand.hbm [shape: f32[2,8,32], index: 10, kind: output, shape index: {}]
  %s11 = sld [smem:[#allocation0]]
  $region93: #{tpu_custom_call.1} parent=0
    _
  %s13 = ssub.s32 1, %s11
  %s14 = scalar_select 0, %s13, %s11
  $region1: #{tpu_custom_call.1} parent=0
    #allocation3 [shape = 'u8[8192]{0}', space=vmem, size = 0x2000, scoped, tag = 'input window, operand 1']
    #allocation4 [shape = 's32[2]{0}', space=sflag, size = 0x8, scoped, tag = 'scoped memory for tpu_custom_call.1']
    #allocation5 [shape = 's32[2]{0}', space=sflag, size = 0x8, scoped, tag = 'scoped memory for tpu_custom_call.1']
    #allocation6 [shape = 'u8[4096]{0}', space=vmem, size = 0x1000, scoped, tag = 'input window, operand 2, single buffered']
    #allocation7 [shape = 's32[1]{0}', space=sflag, size = 0x4, scoped, tag = 'scoped memory for tpu_custom_call.1']
    #allocation8 [shape = 'u8[16384]{0}', space=vmem, size = 0x4000, scoped, tag = 'input window, operand 7']
    #allocation9 [shape = 'u8[8192]{0}', space=vmem, size = 0x2000, scoped, tag = 'output window, operand 0']
    %15 = vsyncpa [#allocation4], 0
    %s16 = scalar_lea.sflag [#allocation4], 1
    %17 = vsyncpa %s16, 0
    %18 = vsyncpa [#allocation7], 0
    %19 = vsyncpa [#allocation5], 0
    %s20 = scalar_lea.sflag [#allocation5], 1
    %21 = vsyncpa %s20, 0
    loop: start=0, step=1, limit=6
    $region2: #{tpu_custom_call.1} parent=1 // loop_pre_header
      _
    $region3: #{tpu_custom_call.1} parent=1 // loop_header
      %s23 = sphi 0, %s27
      %p24 = scmp.ge.s32.totalorder %s23, 6
      %s30 = sphi 0, %s42
      %s31 = sphi 0, %s38
      %s32 = sphi 0, %s30
      %s33 = sphi 0, %s31
      %s34 = sphi 0, %s32
      %s35 = sphi 0, %s33
      %s45 = sphi 0, %s47
      %s48 = sphi 0, %s45
      %s49 = sphi 0, %s48
      %s65 = sphi 0, %s49
      %s71 = sphi 0, %s73
      %s74 = sphi 0, %s71
      %s75 = sphi 0, %s74
      %s91 = sphi 0, %s75
      %s95 = sphi 0, %s95
      %s97 = sphi 0, %s95
      %s98 = sphi 0, %s97
      %s112 = sphi 0, %s98
      %s118 = sphi 0, %s120
      %s121 = sphi 0, %s118
      %s122 = sphi 0, %s121
      %s138 = sphi 0, %s122
      %s144 = sphi 0, %s146
      %s147 = sphi 0, %s144
      %s148 = sphi 0, %s147
      %s164 = sphi 0, %s148
      %s170 = sphi 0, %s172
      %s173 = sphi 0, %s170
      %s174 = sphi 0, %s173
      %s190 = sphi 0, %s174
      %s196 = sphi 0, %s198
      %s199 = sphi 0, %s196
      %s200 = sphi 0, %s199
      %s216 = sphi 0, %s200
      %s222 = sphi 0, %s224
      %s225 = sphi 0, %s222
      %s226 = sphi 0, %s225
      %s242 = sphi 0, %s226
      %s248 = sphi 0, %s250
      %s251 = sphi 0, %s248
      %s252 = sphi 0, %s251
      %s268 = sphi 0, %s252
      %s274 = sphi 0, %s276
      %s277 = sphi 0, %s274
      %s278 = sphi 0, %s277
      %s294 = sphi 0, %s278
      %s300 = sphi 0, %s302
      %s303 = sphi 0, %s300
      %s304 = sphi 0, %s303
      %s320 = sphi 0, %s304
    $region4: #{tpu_custom_call.1} parent=1 // loop_header_branch
      %26 = sbr.rel (%p24) target = $region8
    $region5: #{tpu_custom_call.1} parent=1 // loop_body
      %s28 = ssub.s32 %s23, 1
      %s29 = ssub.s32 %s23, 2
      %s36 = sadd.s32 1, %s31
      %p37 = scmp.ge.s32.totalorder %s36, 2
      %s38 = scalar_select %p37, 0, %s36
      %s39 = sadd.s32 1, %s30
      %s40 = scalar_select %p37, %s39, %s30
      %p41 = scmp.ge.s32.totalorder %s40, 2
      %s42 = scalar_select %p41, 0, %s40
      %s43 = ssub.s32 %s30, %s42
      %p44 = scmp.eq.s32.totalorder %s43, 0
      %s46 = sadd.s32 %s45, 1
      %s47 = scalar_select %p44, %s45, %s46
      %p50 = pneg %p44
      %p51 = scmp.eq.s32.totalorder %s23, 3
      %p52 = por %p50, %p51
      %p53 = scmp.ne.s32.totalorder %s45, %s48
      %p54 = scmp.eq.s32.totalorder %s23, 0
      %p55 = por %p53, %p54
      %p56 = scmp.ne.s32.totalorder %s45, %s48
      %p57 = scmp.eq.s32.totalorder %s28, 3
      %p58 = por %p56, %p57
      %p59 = scmp.ne.s32.totalorder %s48, %s49
      %p60 = scmp.eq.s32.totalorder %s28, 0
      %p61 = por %p59, %p60
      %p62 = scmp.ne.s32.totalorder %s48, %s49
      %p63 = scmp.eq.s32.totalorder %s29, 3
      %p64 = por %p62, %p63
      %p66 = scmp.ne.s32.totalorder %s49, %s65
      %p67 = scmp.eq.s32.totalorder %s29, 0
      %p68 = por %p66, %p67
      %s69 = ssub.s32 %s30, %s42
      %p70 = scmp.eq.s32.totalorder %s69, 0
      %s72 = sadd.s32 %s71, 1
      %s73 = scalar_select %p70, %s71, %s72
      %p76 = pneg %p70
      %p77 = scmp.eq.s32.totalorder %s23, 3
      %p78 = por %p76, %p77
      %p79 = scmp.ne.s32.totalorder %s71, %s74
      %p80 = scmp.eq.s32.totalorder %s23, 0
      %p81 = por %p79, %p80
      %p82 = scmp.ne.s32.totalorder %s71, %s74
      %p83 = scmp.eq.s32.totalorder %s28, 3
      %p84 = por %p82, %p83
      %p85 = scmp.ne.s32.totalorder %s74, %s75
      %p86 = scmp.eq.s32.totalorder %s28, 0
      %p87 = por %p85, %p86
      %p88 = scmp.ne.s32.totalorder %s74, %s75
      %p89 = scmp.eq.s32.totalorder %s29, 3
      %p90 = por %p88, %p89
      %p92 = scmp.ne.s32.totalorder %s75, %s91
      %p93 = scmp.eq.s32.totalorder %s29, 0
      %p94 = por %p92, %p93
      %s96 = sadd.s32 %s95, 1
      %p99 = scmp.eq.s32.totalorder %s23, 3
      %p100 = scmp.ne.s32.totalorder %s95, %s97
      %p101 = scmp.eq.s32.totalorder %s23, 0
      %p102 = por %p100, %p101
      %p103 = scmp.ne.s32.totalorder %s95, %s97
      %p104 = scmp.eq.s32.totalorder %s28, 3
      %p105 = por %p103, %p104
      %p106 = scmp.ne.s32.totalorder %s97, %s98
      %p107 = scmp.eq.s32.totalorder %s28, 0
      %p108 = por %p106, %p107
      %p109 = scmp.ne.s32.totalorder %s97, %s98
      %p110 = scmp.eq.s32.totalorder %s29, 3
      %p111 = por %p109, %p110
      %p113 = scmp.ne.s32.totalorder %s98, %s112
      %p114 = scmp.eq.s32.totalorder %s29, 0
      %p115 = por %p113, %p114
      %s116 = ssub.s32 %s31, %s38
      %p117 = scmp.eq.s32.totalorder %s116, 0
      %s119 = sadd.s32 %s118, 1
      %s120 = scalar_select %p117, %s118, %s119
      %p123 = pneg %p117
      %p124 = scmp.eq.s32.totalorder %s23, 3
      %p125 = por %p123, %p124
      %p126 = scmp.ne.s32.totalorder %s118, %s121
      %p127 = scmp.eq.s32.totalorder %s23, 0
      %p128 = por %p126, %p127
      %p129 = scmp.ne.s32.totalorder %s118, %s121
      %p130 = scmp.eq.s32.totalorder %s28, 3
      %p131 = por %p129, %p130
      %p132 = scmp.ne.s32.totalorder %s121, %s122
      %p133 = scmp.eq.s32.totalorder %s28, 0
      %p134 = por %p132, %p133
      %p135 = scmp.ne.s32.totalorder %s121, %s122
      %p136 = scmp.eq.s32.totalorder %s29, 3
      %p137 = por %p135, %p136
      %p139 = scmp.ne.s32.totalorder %s122, %s138
      %p140 = scmp.eq.s32.totalorder %s29, 0
      %p141 = por %p139, %p140
      %s142 = ssub.s32 %s31, %s38
      %p143 = scmp.eq.s32.totalorder %s142, 0
      %s145 = sadd.s32 %s144, 1
      %s146 = scalar_select %p143, %s144, %s145
      %p149 = pneg %p143
      %p150 = scmp.eq.s32.totalorder %s23, 3
      %p151 = por %p149, %p150
      %p152 = scmp.ne.s32.totalorder %s144, %s147
      %p153 = scmp.eq.s32.totalorder %s23, 0
      %p154 = por %p152, %p153
      %p155 = scmp.ne.s32.totalorder %s144, %s147
      %p156 = scmp.eq.s32.totalorder %s28, 3
      %p157 = por %p155, %p156
      %p158 = scmp.ne.s32.totalorder %s147, %s148
      %p159 = scmp.eq.s32.totalorder %s28, 0
      %p160 = por %p158, %p159
      %p161 = scmp.ne.s32.totalorder %s147, %s148
      %p162 = scmp.eq.s32.totalorder %s29, 3
      %p163 = por %p161, %p162
      %p165 = scmp.ne.s32.totalorder %s148, %s164
      %p166 = scmp.eq.s32.totalorder %s29, 0
      %p167 = por %p165, %p166
      %s168 = ssub.s32 %s31, %s38
      %p169 = scmp.eq.s32.totalorder %s168, 0
      %s171 = sadd.s32 %s170, 1
      %s172 = scalar_select %p169, %s170, %s171
      %p175 = pneg %p169
      %p176 = scmp.eq.s32.totalorder %s23, 3
      %p177 = por %p175, %p176
      %p178 = scmp.ne.s32.totalorder %s170, %s173
      %p179 = scmp.eq.s32.totalorder %s23, 0
      %p180 = por %p178, %p179
      %p181 = scmp.ne.s32.totalorder %s170, %s173
      %p182 = scmp.eq.s32.totalorder %s28, 3
      %p183 = por %p181, %p182
      %p184 = scmp.ne.s32.totalorder %s173, %s174
      %p185 = scmp.eq.s32.totalorder %s28, 0
      %p186 = por %p184, %p185
      %p187 = scmp.ne.s32.totalorder %s173, %s174
      %p188 = scmp.eq.s32.totalorder %s29, 3
      %p189 = por %p187, %p188
      %p191 = scmp.ne.s32.totalorder %s174, %s190
      %p192 = scmp.eq.s32.totalorder %s29, 0
      %p193 = por %p191, %p192
      %s194 = ssub.s32 %s31, %s38
      %p195 = scmp.eq.s32.totalorder %s194, 0
      %s197 = sadd.s32 %s196, 1
      %s198 = scalar_select %p195, %s196, %s197
      %p201 = pneg %p195
      %p202 = scmp.eq.s32.totalorder %s23, 3
      %p203 = por %p201, %p202
      %p204 = scmp.ne.s32.totalorder %s196, %s199
      %p205 = scmp.eq.s32.totalorder %s23, 0
      %p206 = por %p204, %p205
      %p207 = scmp.ne.s32.totalorder %s196, %s199
      %p208 = scmp.eq.s32.totalorder %s28, 3
      %p209 = por %p207, %p208
      %p210 = scmp.ne.s32.totalorder %s199, %s200
      %p211 = scmp.eq.s32.totalorder %s28, 0
      %p212 = por %p210, %p211
      %p213 = scmp.ne.s32.totalorder %s199, %s200
      %p214 = scmp.eq.s32.totalorder %s29, 3
      %p215 = por %p213, %p214
      %p217 = scmp.ne.s32.totalorder %s200, %s216
      %p218 = scmp.eq.s32.totalorder %s29, 0
      %p219 = por %p217, %p218
      %s220 = ssub.s32 %s31, %s38
      %p221 = scmp.eq.s32.totalorder %s220, 0
      %s223 = sadd.s32 %s222, 1
      %s224 = scalar_select %p221, %s222, %s223
      %p227 = pneg %p221
      %p228 = scmp.eq.s32.totalorder %s23, 3
      %p229 = por %p227, %p228
      %p230 = scmp.ne.s32.totalorder %s222, %s225
      %p231 = scmp.eq.s32.totalorder %s23, 0
      %p232 = por %p230, %p231
      %p233 = scmp.ne.s32.totalorder %s222, %s225
      %p234 = scmp.eq.s32.totalorder %s28, 3
      %p235 = por %p233, %p234
      %p236 = scmp.ne.s32.totalorder %s225, %s226
      %p237 = scmp.eq.s32.totalorder %s28, 0
      %p238 = por %p236, %p237
      %p239 = scmp.ne.s32.totalorder %s225, %s226
      %p240 = scmp.eq.s32.totalorder %s29, 3
      %p241 = por %p239, %p240
      %p243 = scmp.ne.s32.totalorder %s226, %s242
      %p244 = scmp.eq.s32.totalorder %s29, 0
      %p245 = por %p243, %p244
      %s246 = ssub.s32 %s31, %s38
      %p247 = scmp.eq.s32.totalorder %s246, 0
      %s249 = sadd.s32 %s248, 1
      %s250 = scalar_select %p247, %s248, %s249
      %p253 = pneg %p247
      %p254 = scmp.eq.s32.totalorder %s23, 3
      %p255 = por %p253, %p254
      %p256 = scmp.ne.s32.totalorder %s248, %s251
      %p257 = scmp.eq.s32.totalorder %s23, 0
      %p258 = por %p256, %p257
      %p259 = scmp.ne.s32.totalorder %s248, %s251
      %p260 = scmp.eq.s32.totalorder %s28, 3
      %p261 = por %p259, %p260
      %p262 = scmp.ne.s32.totalorder %s251, %s252
      %p263 = scmp.eq.s32.totalorder %s28, 0
      %p264 = por %p262, %p263
      %p265 = scmp.ne.s32.totalorder %s251, %s252
      %p266 = scmp.eq.s32.totalorder %s29, 3
      %p267 = por %p265, %p266
      %p269 = scmp.ne.s32.totalorder %s252, %s268
      %p270 = scmp.eq.s32.totalorder %s29, 0
      %p271 = por %p269, %p270
      %s272 = ssub.s32 %s31, %s38
      %p273 = scmp.eq.s32.totalorder %s272, 0
      %s275 = sadd.s32 %s274, 1
      %s276 = scalar_select %p273, %s274, %s275
      %p279 = pneg %p273
      %p280 = scmp.eq.s32.totalorder %s23, 3
      %p281 = por %p279, %p280
      %p282 = scmp.ne.s32.totalorder %s274, %s277
      %p283 = scmp.eq.s32.totalorder %s23, 0
      %p284 = por %p282, %p283
      %p285 = scmp.ne.s32.totalorder %s274, %s277
      %p286 = scmp.eq.s32.totalorder %s28, 3
      %p287 = por %p285, %p286
      %p288 = scmp.ne.s32.totalorder %s277, %s278
      %p289 = scmp.eq.s32.totalorder %s28, 0
      %p290 = por %p288, %p289
      %p291 = scmp.ne.s32.totalorder %s277, %s278
      %p292 = scmp.eq.s32.totalorder %s29, 3
      %p293 = por %p291, %p292
      %p295 = scmp.ne.s32.totalorder %s278, %s294
      %p296 = scmp.eq.s32.totalorder %s29, 0
      %p297 = por %p295, %p296
      %s298 = ssub.s32 %s30, %s42
      %p299 = scmp.eq.s32.totalorder %s298, 0
      %s301 = sadd.s32 %s300, 1
      %s302 = scalar_select %p299, %s300, %s301
      %p305 = pneg %p299
      %p306 = scmp.eq.s32.totalorder %s23, 3
      %p307 = por %p305, %p306
      %p308 = scmp.ne.s32.totalorder %s300, %s303
      %p309 = scmp.eq.s32.totalorder %s23, 0
      %p310 = por %p308, %p309
      %p311 = scmp.ne.s32.totalorder %s300, %s303
      %p312 = scmp.eq.s32.totalorder %s28, 3
      %p313 = por %p311, %p312
      %p314 = scmp.ne.s32.totalorder %s303, %s304
      %p315 = scmp.eq.s32.totalorder %s28, 0
      %p316 = por %p314, %p315
      %p317 = scmp.ne.s32.totalorder %s303, %s304
      %p318 = scmp.eq.s32.totalorder %s29, 3
      %p319 = por %p317, %p318
      %p321 = scmp.ne.s32.totalorder %s304, %s320
      %p322 = scmp.eq.s32.totalorder %s29, 0
      %p323 = por %p321, %p322
      %p324 = scmp.le.s32.totalorder 1, %s23
      %p325 = scmp.lt.s32.totalorder %s23, 5
      %p326 = pnand %p324, %p325
      %p327 = pneg %p326
      // Predicated region
      $region9: #{tpu_custom_call.1} parent=5 // pred_check
        _
      $region10: #{tpu_custom_call.1} parent=5 // pred_check_branch
        %329 = sbr.rel (%p326) target = $region12
      $region11: #{tpu_custom_call.1} parent=5 // pred_region
        %s330 = ssub.s32 %s23, 1
        // Predicated region
        $region13: #{tpu_custom_call.1} parent=11 // pred_check
          %p331 = pneg %p108
        $region14: #{tpu_custom_call.1} parent=11 // pred_check_branch
          %333 = sbr.rel (%p331) target = $region16
        $region15: #{tpu_custom_call.1} parent=11 // pred_region
          %s335 = ssub.s32 128, 128
          %336 = vsyncadd [#allocation7], %s335
          %s338 = sshll.u32 [#allocation6], 4
          %s339 = int_to_ptr.vmem [resolvable:$true] %s338
          %341 = dma.hbm_to_vmem [thread:$0]  %s2, 128, %s339, [#allocation7]
        $region16: #{tpu_custom_call.1} parent=11 // pred_fallthru
          _
      $region12: #{tpu_custom_call.1} parent=5 // pred_fallthru
        _
      %p342 = scmp.lt.s32.totalorder %s23, 4
      // Predicated region
      $region17: #{tpu_custom_call.1} parent=5 // pred_check
        %p343 = pneg %p342
      $region18: #{tpu_custom_call.1} parent=5 // pred_check_branch
        %345 = sbr.rel (%p343) target = $region20
      $region19: #{tpu_custom_call.1} parent=5 // pred_region
        // Predicated region
        $region21: #{tpu_custom_call.1} parent=19 // pred_check
          %p346 = pneg %p55
        $region22: #{tpu_custom_call.1} parent=19 // pred_check_branch
          %348 = sbr.rel (%p346) target = $region24
        $region23: #{tpu_custom_call.1} parent=19 // pred_region
          %p349 = scmp.lt.s32.totalorder %s30, 1
          %s350 = scalar_select %p349, %s30, 1
          %s351 = scalar_lea.vmem %s0, %s350
        $region24: #{tpu_custom_call.1} parent=19 // pred_fallthru
          _
        // Predicated region
        $region25: #{tpu_custom_call.1} parent=19 // pred_check
          %p352 = pneg %p81
        $region26: #{tpu_custom_call.1} parent=19 // pred_check_branch
          %354 = sbr.rel (%p352) target = $region28
        $region27: #{tpu_custom_call.1} parent=19 // pred_region
          %s355 = sand.u32 %s23, 1
          %s356 = scalar_lea.sflag [#allocation4], %s355
          %s357 = sand.u32 %s71, 1
          %s358 = smul.addr %s357, 8
          %s359 = scalar_lea.vmem [#allocation3], %s358
          %s361 = ssub.s32 128, 128
          %362 = vsyncadd %s356, %s361
          %s363 = smul.addr %s30, 128
          %s364 = scalar_lea.hbm %s1, %s363
          %s366 = sshll.u32 %s359, 4
          %s367 = int_to_ptr.vmem [resolvable:$true] %s366
          %369 = dma.hbm_to_vmem [thread:$0]  %s364, 128, %s367, %s356
        $region28: #{tpu_custom_call.1} parent=19 // pred_fallthru
          _
        // Predicated region
        $region29: #{tpu_custom_call.1} parent=19 // pred_check
          %p370 = pneg %p128
        $region30: #{tpu_custom_call.1} parent=19 // pred_check_branch
          %372 = sbr.rel (%p370) target = $region32
        $region31: #{tpu_custom_call.1} parent=19 // pred_region
          %p373 = scmp.lt.s32.totalorder %s31, 1
          %s374 = scalar_select %p373, %s31, 1
          %s375 = smul.addr %s374, 4
          %s376 = smul.addr %s375, 4
          %s377 = scalar_lea.vmem %s3, %s376
        $region32: #{tpu_custom_call.1} parent=19 // pred_fallthru
          _
        // Predicated region
        $region33: #{tpu_custom_call.1} parent=19 // pred_check
          %p378 = pneg %p154
        $region34: #{tpu_custom_call.1} parent=19 // pred_check_branch
          %380 = sbr.rel (%p378) target = $region36
        $region35: #{tpu_custom_call.1} parent=19 // pred_region
          %p381 = scmp.lt.s32.totalorder %s31, 1
          %s382 = scalar_select %p381, %s31, 1
          %s383 = smul.addr %s382, 4
          %s384 = smul.addr %s383, 4
          %s385 = scalar_lea.vmem %s4, %s384
        $region36: #{tpu_custom_call.1} parent=19 // pred_fallthru
          _
        // Predicated region
        $region37: #{tpu_custom_call.1} parent=19 // pred_check
          %p386 = pneg %p180
        $region38: #{tpu_custom_call.1} parent=19 // pred_check_branch
          %388 = sbr.rel (%p386) target = $region40
        $region39: #{tpu_custom_call.1} parent=19 // pred_region
          %p389 = scmp.lt.s32.totalorder %s31, 1
          %s390 = scalar_select %p389, %s31, 1
          %s391 = smul.addr %s390, 4
          %s392 = smul.addr %s391, 4
          %s393 = scalar_lea.vmem %s5, %s392
        $region40: #{tpu_custom_call.1} parent=19 // pred_fallthru
          _
        // Predicated region
        $region41: #{tpu_custom_call.1} parent=19 // pred_check
          %p394 = pneg %p206
        $region42: #{tpu_custom_call.1} parent=19 // pred_check_branch
          %396 = sbr.rel (%p394) target = $region44
        $region43: #{tpu_custom_call.1} parent=19 // pred_region
          %p397 = scmp.lt.s32.totalorder %s31, 1
          %s398 = scalar_select %p397, %s31, 1
          %s399 = smul.addr %s398, 4
          %s400 = smul.addr %s399, 4
          %s401 = scalar_lea.vmem %s6, %s400
        $region44: #{tpu_custom_call.1} parent=19 // pred_fallthru
          _
        // Predicated region
        $region45: #{tpu_custom_call.1} parent=19 // pred_check
          %p402 = pneg %p232
        $region46: #{tpu_custom_call.1} parent=19 // pred_check_branch
          %404 = sbr.rel (%p402) target = $region48
        $region47: #{tpu_custom_call.1} parent=19 // pred_region
          %s405 = sand.u32 %s23, 1
          %s406 = scalar_lea.sflag [#allocation4], %s405
          %s407 = sand.u32 %s222, 1
          %s408 = smul.addr %s407, 16
          %s409 = scalar_lea.vmem [#allocation8], %s408
          %s411 = ssub.s32 256, 256
          %412 = vsyncadd %s406, %s411
          %s413 = smul.addr %s31, 4
          %s414 = smul.addr %s413, 64
          %s415 = scalar_lea.hbm %s7, %s414
          %s416 = sshll.u32 %s409, 4
          %s417 = int_to_ptr.vmem [resolvable:$true] %s416
          %422 = dma.hbm_to_vmem [thread:$0]  %s415, 256, %s417, %s406, 64, 64, 4
        $region48: #{tpu_custom_call.1} parent=19 // pred_fallthru
          _
        // Predicated region
        $region49: #{tpu_custom_call.1} parent=19 // pred_check
          %p423 = pneg %p258
        $region50: #{tpu_custom_call.1} parent=19 // pred_check_branch
          %425 = sbr.rel (%p423) target = $region52
        $region51: #{tpu_custom_call.1} parent=19 // pred_region
          %p426 = scmp.lt.s32.totalorder %s31, 1
          %s427 = scalar_select %p426, %s31, 1
          %s428 = smul.addr %s427, 8
          %s429 = smul.addr %s428, 4
          %s430 = scalar_lea.vmem %s8, %s429
        $region52: #{tpu_custom_call.1} parent=19 // pred_fallthru
          _
        // Predicated region
        $region53: #{tpu_custom_call.1} parent=19 // pred_check
          %p431 = pneg %p284
        $region54: #{tpu_custom_call.1} parent=19 // pred_check_branch
          %433 = sbr.rel (%p431) target = $region56
        $region55: #{tpu_custom_call.1} parent=19 // pred_region
          %p434 = scmp.lt.s32.totalorder %s31, 1
          %s435 = scalar_select %p434, %s31, 1
          %s436 = smul.addr %s435, 2
          %s437 = smul.addr %s436, 8
          %s438 = scalar_lea.vmem %s9, %s437
        $region56: #{tpu_custom_call.1} parent=19 // pred_fallthru
          _
      $region20: #{tpu_custom_call.1} parent=5 // pred_fallthru
        _
      %p439 = scmp.le.s32.totalorder 1, %s23
      %p440 = scmp.lt.s32.totalorder %s23, 5
      %p441 = pnand %p439, %p440
      %p442 = pneg %p441
      // Predicated region
      $region57: #{tpu_custom_call.1} parent=5 // pred_check
        _
      $region58: #{tpu_custom_call.1} parent=5 // pred_check_branch
        %444 = sbr.rel (%p441) target = $region60
      $region59: #{tpu_custom_call.1} parent=5 // pred_region
        %s445 = ssub.s32 %s23, 1
        %s446 = sand.u32 %s28, 1
        %s447 = scalar_lea.sflag [#allocation4], %s446
        %s448 = sand.u32 %s74, 1
        %s449 = smul.addr %s448, 8
        %s450 = scalar_lea.vmem [#allocation3], %s449
        // Predicated region
        $region61: #{tpu_custom_call.1} parent=59 // pred_check
          %p451 = pneg %p87
        $region62: #{tpu_custom_call.1} parent=59 // pred_check_branch
          %453 = sbr.rel (%p451) target = $region64
        $region63: #{tpu_custom_call.1} parent=59 // pred_region
          %454 = dma.done %s447, 128
        $region64: #{tpu_custom_call.1} parent=59 // pred_fallthru
          _
        // Predicated region
        $region65: #{tpu_custom_call.1} parent=59 // pred_check
          %p455 = pneg %p108
        $region66: #{tpu_custom_call.1} parent=59 // pred_check_branch
          %457 = sbr.rel (%p455) target = $region68
        $region67: #{tpu_custom_call.1} parent=59 // pred_region
          %458 = dma.done [#allocation7], 128
        $region68: #{tpu_custom_call.1} parent=59 // pred_fallthru
          _
        %s459 = sand.u32 %s28, 1
        %s460 = scalar_lea.sflag [#allocation4], %s459
        %s461 = sand.u32 %s225, 1
        %s462 = smul.addr %s461, 16
        %s463 = scalar_lea.vmem [#allocation8], %s462
        // Predicated region
        $region69: #{tpu_custom_call.1} parent=59 // pred_check
          %p464 = pneg %p238
        $region70: #{tpu_custom_call.1} parent=59 // pred_check_branch
          %466 = sbr.rel (%p464) target = $region72
        $region71: #{tpu_custom_call.1} parent=59 // pred_region
          %467 = dma.done %s460, 256
        $region72: #{tpu_custom_call.1} parent=59 // pred_fallthru
          _
        %p468 = scmp.lt.s32.totalorder %s32, 1
        %s469 = scalar_select %p468, %s32, 1
        %s470 = scalar_lea.vmem %s0, %s469
        %p471 = pneg %p61
        %p472 = pneg %p58
        %s473 = sand.u32 %s28, 1
        %s474 = scalar_lea.sflag [#allocation4], %s473
        %s475 = sand.u32 %s74, 1
        %s476 = smul.addr %s475, 8
        %s477 = scalar_lea.vmem [#allocation3], %s476
        %p478 = pneg %p87
        %p479 = pneg %p84
        %p480 = pneg %p108
        %p481 = pneg %p105
        %p482 = scmp.lt.s32.totalorder %s33, 1
        %s483 = scalar_select %p482, %s33, 1
        %s484 = smul.addr %s483, 4
        %s485 = smul.addr %s484, 4
        %s486 = scalar_lea.vmem %s3, %s485
        %p487 = pneg %p134
        %p488 = pneg %p131
        %p489 = scmp.lt.s32.totalorder %s33, 1
        %s490 = scalar_select %p489, %s33, 1
        %s491 = smul.addr %s490, 4
        %s492 = smul.addr %s491, 4
        %s493 = scalar_lea.vmem %s4, %s492
        %p494 = pneg %p160
        %p495 = pneg %p157
        %p496 = scmp.lt.s32.totalorder %s33, 1
        %s497 = scalar_select %p496, %s33, 1
        %s498 = smul.addr %s497, 4
        %s499 = smul.addr %s498, 4
        %s500 = scalar_lea.vmem %s5, %s499
        %p501 = pneg %p186
        %p502 = pneg %p183
        %p503 = scmp.lt.s32.totalorder %s33, 1
        %s504 = scalar_select %p503, %s33, 1
        %s505 = smul.addr %s504, 4
        %s506 = smul.addr %s505, 4
        %s507 = scalar_lea.vmem %s6, %s506
        %p508 = pneg %p212
        %p509 = pneg %p209
        %s510 = sand.u32 %s28, 1
        %s511 = scalar_lea.sflag [#allocation4], %s510
        %s512 = sand.u32 %s225, 1
        %s513 = smul.addr %s512, 16
        %s514 = scalar_lea.vmem [#allocation8], %s513
        %p515 = pneg %p238
        %p516 = pneg %p235
        %p517 = scmp.lt.s32.totalorder %s33, 1
        %s518 = scalar_select %p517, %s33, 1
        %s519 = smul.addr %s518, 8
        %s520 = smul.addr %s519, 4
        %s521 = scalar_lea.vmem %s8, %s520
        %p522 = pneg %p264
        %p523 = pneg %p261
        %p524 = scmp.lt.s32.totalorder %s33, 1
        %s525 = scalar_select %p524, %s33, 1
        %s526 = smul.addr %s525, 2
        %s527 = smul.addr %s526, 8
        %s528 = scalar_lea.vmem %s9, %s527
        %p529 = pneg %p290
        %p530 = pneg %p287
        %p531 = pneg %p316
        %p532 = pneg %p313
        %s533 = sand.u32 %s303, 1
        %s534 = scalar_lea.sflag [#allocation5], %s533
        %s535 = sand.u32 %s303, 1
        %s536 = smul.addr %s535, 8
        %s537 = scalar_lea.vmem [#allocation9], %s536
        %p538 = scmp.lt.s32.totalorder %s32, 1
        %s539 = scalar_select %p538, %s32, 1
        %s540 = scalar_lea.vmem %s0, %s539
        %p541 = scmp.lt.s32.totalorder %s33, 1
        %s542 = scalar_select %p541, %s33, 1
        %s543 = smul.addr %s542, 4
        %s544 = smul.addr %s543, 4
        %s545 = scalar_lea.vmem %s3, %s544
        %p546 = scmp.lt.s32.totalorder %s33, 1
        %s547 = scalar_select %p546, %s33, 1
        %s548 = smul.addr %s547, 4
        %s549 = smul.addr %s548, 4
        %s550 = scalar_lea.vmem %s4, %s549
        %p551 = scmp.lt.s32.totalorder %s33, 1
        %s552 = scalar_select %p551, %s33, 1
        %s553 = smul.addr %s552, 4
        %s554 = smul.addr %s553, 4
        %s555 = scalar_lea.vmem %s5, %s554
        %p556 = scmp.lt.s32.totalorder %s33, 1
        %s557 = scalar_select %p556, %s33, 1
        %s558 = smul.addr %s557, 4
        %s559 = smul.addr %s558, 4
        %s560 = scalar_lea.vmem %s6, %s559
        %p561 = scmp.lt.s32.totalorder %s33, 1
        %s562 = scalar_select %p561, %s33, 1
        %s563 = smul.addr %s562, 8
        %s564 = smul.addr %s563, 4
        %s565 = scalar_lea.vmem %s8, %s564
        %p566 = scmp.lt.s32.totalorder %s33, 1
        %s567 = scalar_select %p566, %s33, 1
        %s568 = smul.addr %s567, 2
        %s569 = smul.addr %s568, 8
        %s570 = scalar_lea.vmem %s9, %s569
        %p572 = scmp.eq.s32.totalorder %s33, 0
        // Predicated region
        $region73: #{tpu_custom_call.1} parent=59 // pred_check
          %p573 = pneg %p572
        $region74: #{tpu_custom_call.1} parent=59 // pred_check_branch
          %575 = sbr.rel (%p573) target = $region76
        $region75: #{tpu_custom_call.1} parent=59 // pred_region
          %v576 = vld [vmem:[%s450] sm:$0xff]
          %v577 = vmul.f32 %v576, 5.656854
          %v578 = vld [vmem:[#allocation6] sm:$0xff]
          %v579 = vadd.f32 %v577, %v578
          %vm580 = vcmask 261120
          %581 = vst.msk [vmem:[#allocation2] sm:$0xff] %vm580, %v579
        $region76: #{tpu_custom_call.1} parent=59 // pred_fallthru
          _
        %v582 = vld [vmem:[#allocation2] sm:$0xff]
        %v583 = vld [vmem:[%s540] sm:$0x1]
        %v584 = vld [vmem:[%s570] sm:$0xff]
        %v585 = vld [vmem:[%s570 + $0x8] sm:$0x3]
        %v586 = vpack.c.bf16 %v582, %v582
        %v587 = vld [vmem:[%s545] sm:$0xf]
        %v588 = vld [vmem:[%s545 + $0x4] sm:$0xf]
        %v589 = vld [vmem:[%s545 + $0x8] sm:$0xf]
        %v590 = vld [vmem:[%s545 + $0xc] sm:$0xf]
        %v591 = vlaneseq
        %v592 = vshrl.u32 %v591, 7
        %v593 = vsub.s32 0, %v592
        %v594 = vrot.slane %v584, %v593
        %v599 = vunpack.c.l.b16 %v587
        %v600 = vunpack.c.l.b16 %v588
        %v601 = vunpack.c.l.b16 %v589
        %v602 = vunpack.c.l.b16 %v590
        %v603 = vpack.c.b16 %v600, %v599
        %v604 = vpack.c.b16 %v602, %v601
        %vm607 = vcmask 261120
        %v609 = vsel %vm607, %v586, 0
        %611 = vmatprep.subr.bf16.mxu0 0
        %612 = vmatpush1.bf16.msra.mxu0 %v603
        %613 = vmatprep.subr.bf16.mxu0 0
        %614 = vmatpush1.bf16.msra.mxu0 %v604
        %615 = vmatprep.subr.bf16.mxu0 0
        %616 = vmatpush1.bf16.msra.mxu0 0
        %617 = vmatprep.subr.bf16.mxu0 0
        %618 = vmatpush1.bf16.msra.mxu0 0
        %619 = vmatprep.subr.bf16.mxu0 0
        %620 = vmatpush1.bf16.msra.mxu0 0
        %621 = vmatprep.subr.bf16.mxu0 0
        %622 = vmatpush1.bf16.msra.mxu0 0
        %623 = vmatprep.subr.bf16.mxu0 0
        %624 = vmatpush1.bf16.msra.mxu0 0
        %625 = vmatprep.subr.bf16.mxu0 0
        %626 = vmatpush1.bf16.msra.mxu0 0
        %627 = vmatprep.subr.bf16.mxu0 0
        %628 = vmatpush1.bf16.msra.mxu0 0
        %629 = vmatprep.subr.bf16.mxu0 0
        %630 = vmatpush1.bf16.msra.mxu0 0
        %631 = vmatprep.subr.bf16.mxu0 0
        %632 = vmatpush1.bf16.msra.mxu0 0
        %633 = vmatprep.subr.bf16.mxu0 0
        %634 = vmatpush1.bf16.msra.mxu0 0
        %635 = vmatprep.subr.bf16.mxu0 0
        %636 = vmatpush1.bf16.msra.mxu0 0
        %637 = vmatprep.subr.bf16.mxu0 0
        %638 = vmatpush1.bf16.msra.mxu0 0
        %639 = vmatprep.subr.bf16.mxu0 0
        %640 = vmatpush1.bf16.msra.mxu0 0
        %641 = vmatprep.subr.bf16.mxu0 0
        %642 = vmatpush1.bf16.msra.mxu0 0
        %643 = vmatprep.mubr.bf16.mxu0 0
        %644 = vmatmul.mubr.bf16.gmra.mrb[0].mxu0 %v609
        %v645 = vpop.f32.mrb[0].mxu0
        %v646 = vadd.f32 %v594, %v645
        %v647 = vpop.f32.mrb[0].mxu0
        %v648 = vpop.f32.mrb[0].mxu0
        %v649 = vpop.f32.mrb[0].mxu0
        %650 = vdwg.mxu0
        %v651 = vld [vmem:[%s550] sm:$0xf]
        %v652 = vld [vmem:[%s550 + $0x4] sm:$0xf]
        %v653 = vld [vmem:[%s550 + $0x8] sm:$0xf]
        %v654 = vld [vmem:[%s550 + $0xc] sm:$0xf]
        %v655 = vlaneseq
        %v656 = vshrl.u32 %v655, 7
        %v657 = vsub.s32 1, %v656
        %v658 = vrot.slane %v584, %v657
        %v663 = vunpack.c.l.b16 %v651
        %v664 = vunpack.c.l.b16 %v652
        %v665 = vunpack.c.l.b16 %v653
        %v666 = vunpack.c.l.b16 %v654
        %v667 = vpack.c.b16 %v664, %v663
        %v668 = vpack.c.b16 %v666, %v665
        %671 = vmatprep.subr.bf16.mxu0 0
        %672 = vmatpush1.bf16.msra.mxu0 %v667
        %673 = vmatprep.subr.bf16.mxu0 0
        %674 = vmatpush1.bf16.msra.mxu0 %v668
        %675 = vmatprep.subr.bf16.mxu0 0
        %676 = vmatpush1.bf16.msra.mxu0 0
        %677 = vmatprep.subr.bf16.mxu0 0
        %678 = vmatpush1.bf16.msra.mxu0 0
        %679 = vmatprep.subr.bf16.mxu0 0
        %680 = vmatpush1.bf16.msra.mxu0 0
        %681 = vmatprep.subr.bf16.mxu0 0
        %682 = vmatpush1.bf16.msra.mxu0 0
        %683 = vmatprep.subr.bf16.mxu0 0
        %684 = vmatpush1.bf16.msra.mxu0 0
        %685 = vmatprep.subr.bf16.mxu0 0
        %686 = vmatpush1.bf16.msra.mxu0 0
        %687 = vmatprep.subr.bf16.mxu0 0
        %688 = vmatpush1.bf16.msra.mxu0 0
        %689 = vmatprep.subr.bf16.mxu0 0
        %690 = vmatpush1.bf16.msra.mxu0 0
        %691 = vmatprep.subr.bf16.mxu0 0
        %692 = vmatpush1.bf16.msra.mxu0 0
        %693 = vmatprep.subr.bf16.mxu0 0
        %694 = vmatpush1.bf16.msra.mxu0 0
        %695 = vmatprep.subr.bf16.mxu0 0
        %696 = vmatpush1.bf16.msra.mxu0 0
        %697 = vmatprep.subr.bf16.mxu0 0
        %698 = vmatpush1.bf16.msra.mxu0 0
        %699 = vmatprep.subr.bf16.mxu0 0
        %700 = vmatpush1.bf16.msra.mxu0 0
        %701 = vmatprep.subr.bf16.mxu0 0
        %702 = vmatpush1.bf16.msra.mxu0 0
        %703 = vmatprep.mubr.bf16.mxu0 0
        %704 = vmatmul.mubr.bf16.gmra.mrb[0].mxu0 %v609
        %v705 = vpop.f32.mrb[0].mxu0
        %v706 = vadd.f32 %v658, %v705
        %v707 = vpop.f32.mrb[0].mxu0
        %v708 = vpop.f32.mrb[0].mxu0
        %v709 = vpop.f32.mrb[0].mxu0
        %710 = vdwg.mxu0
        %v711 = vld [vmem:[%s555] sm:$0xf]
        %v712 = vld [vmem:[%s555 + $0x4] sm:$0xf]
        %v713 = vld [vmem:[%s555 + $0x8] sm:$0xf]
        %v714 = vld [vmem:[%s555 + $0xc] sm:$0xf]
        %v715 = vlaneseq
        %v716 = vshrl.u32 %v715, 7
        %v717 = vsub.s32 2, %v716
        %v718 = vrot.slane %v584, %v717
        %v723 = vunpack.c.l.b16 %v711
        %v724 = vunpack.c.l.b16 %v712
        %v725 = vunpack.c.l.b16 %v713
        %v726 = vunpack.c.l.b16 %v714
        %v727 = vpack.c.b16 %v724, %v723
        %v728 = vpack.c.b16 %v726, %v725
        %731 = vmatprep.subr.bf16.mxu0 0
        %732 = vmatpush1.bf16.msra.mxu0 %v727
        %733 = vmatprep.subr.bf16.mxu0 0
        %734 = vmatpush1.bf16.msra.mxu0 %v728
        %735 = vmatprep.subr.bf16.mxu0 0
        %736 = vmatpush1.bf16.msra.mxu0 0
        %737 = vmatprep.subr.bf16.mxu0 0
        %738 = vmatpush1.bf16.msra.mxu0 0
        %739 = vmatprep.subr.bf16.mxu0 0
        %740 = vmatpush1.bf16.msra.mxu0 0
        %741 = vmatprep.subr.bf16.mxu0 0
        %742 = vmatpush1.bf16.msra.mxu0 0
        %743 = vmatprep.subr.bf16.mxu0 0
        %744 = vmatpush1.bf16.msra.mxu0 0
        %745 = vmatprep.subr.bf16.mxu0 0
        %746 = vmatpush1.bf16.msra.mxu0 0
        %747 = vmatprep.subr.bf16.mxu0 0
        %748 = vmatpush1.bf16.msra.mxu0 0
        %749 = vmatprep.subr.bf16.mxu0 0
        %750 = vmatpush1.bf16.msra.mxu0 0
        %751 = vmatprep.subr.bf16.mxu0 0
        %752 = vmatpush1.bf16.msra.mxu0 0
        %753 = vmatprep.subr.bf16.mxu0 0
        %754 = vmatpush1.bf16.msra.mxu0 0
        %755 = vmatprep.subr.bf16.mxu0 0
        %756 = vmatpush1.bf16.msra.mxu0 0
        %757 = vmatprep.subr.bf16.mxu0 0
        %758 = vmatpush1.bf16.msra.mxu0 0
        %759 = vmatprep.subr.bf16.mxu0 0
        %760 = vmatpush1.bf16.msra.mxu0 0
        %761 = vmatprep.subr.bf16.mxu0 0
        %762 = vmatpush1.bf16.msra.mxu0 0
        %763 = vmatprep.mubr.bf16.mxu0 0
        %764 = vmatmul.mubr.bf16.gmra.mrb[0].mxu0 %v609
        %v765 = vpop.f32.mrb[0].mxu0
        %v766 = vadd.f32 %v718, %v765
        %v767 = vpop.f32.mrb[0].mxu0
        %v768 = vpop.f32.mrb[0].mxu0
        %v769 = vpop.f32.mrb[0].mxu0
        %770 = vdwg.mxu0
        %v771 = vmul.f32 %v646, 0.35355338
        %773 = vrot.lane.b32.xlu0 %v771, 120
        %v774 = vpop.permute.xlu0 %773
        %776 = vrot.lane.b32.xlu0 %v771, 112
        %v777 = vpop.permute.xlu0 %776
        %779 = vrot.lane.b32.xlu0 %v771, 104
        %v780 = vpop.permute.xlu0 %779
        %v782 = vcombine.low %v771, %v777
        %v783 = vcombine.high %v771, %v777
        %v785 = vunpack.c.l.s4 1983009808
        %v786 = vunpack.c.0.s8 %v785
        %v787 = vlaneseq
        %v788 = vshrl.u32 %v787, 7
        %v789 = vsub.s32 %v786, %v788
        %v790 = vrot.slane %v782, %v789
        %v792 = vunpack.c.l.s4 1983009808
        %v793 = vunpack.c.0.s8 %v792
        %v794 = vlaneseq
        %v795 = vshrl.u32 %v794, 7
        %v796 = vsub.s32 %v793, %v795
        %v797 = vrot.slane %v783, %v796
        %v798 = vcombine.low %v774, %v780
        %v799 = vcombine.high %v774, %v780
        %v801 = vunpack.c.l.s4 1983009808
        %v802 = vunpack.c.0.s8 %v801
        %v803 = vlaneseq
        %v804 = vshrl.u32 %v803, 7
        %v805 = vsub.s32 %v802, %v804
        %v806 = vrot.slane %v798, %v805
        %v808 = vunpack.c.l.s4 1983009808
        %v809 = vunpack.c.0.s8 %v808
        %v810 = vlaneseq
        %v811 = vshrl.u32 %v810, 7
        %v812 = vsub.s32 %v809, %v811
        %v813 = vrot.slane %v799, %v812
        %v814 = vcombine.low %v790, %v806
        %v815 = vcombine.high %v790, %v806
        %v817 = vunpack.c.l.s4 1934713408
        %v818 = vunpack.c.0.s8 %v817
        %v819 = vlaneseq
        %v820 = vshrl.u32 %v819, 7
        %v821 = vsub.s32 %v818, %v820
        %v822 = vrot.slane %v814, %v821
        %v824 = vunpack.c.l.s4 1934713408
        %v825 = vunpack.c.0.s8 %v824
        %v826 = vlaneseq
        %v827 = vshrl.u32 %v826, 7
        %v828 = vsub.s32 %v825, %v827
        %v829 = vrot.slane %v815, %v828
        %v830 = vcombine.low %v797, %v813
        %v831 = vcombine.high %v797, %v813
        %v833 = vunpack.c.l.s4 1934713408
        %v834 = vunpack.c.0.s8 %v833
        %v835 = vlaneseq
        %v836 = vshrl.u32 %v835, 7
        %v837 = vsub.s32 %v834, %v836
        %v838 = vrot.slane %v830, %v837
        %v840 = vunpack.c.l.s4 1934713408
        %v841 = vunpack.c.0.s8 %v840
        %v842 = vlaneseq
        %v843 = vshrl.u32 %v842, 7
        %v844 = vsub.s32 %v841, %v843
        %v845 = vrot.slane %v831, %v844
        %v846 = vcombine.high %v822, 0.0
        %v847 = vcombine.high %v829, 0.0
        %v848 = vcombine.high %v838, 0.0
        %v849 = vcombine.high %v845, 0.0
        %851 = vrot.lane.b32.xlu0 %v706, 120
        %v852 = vpop.permute.xlu0 %851
        %854 = vrot.lane.b32.xlu0 %v706, 112
        %v855 = vpop.permute.xlu0 %854
        %857 = vrot.lane.b32.xlu0 %v706, 104
        %v858 = vpop.permute.xlu0 %857
        %v860 = vcombine.low %v706, %v855
        %v861 = vcombine.high %v706, %v855
        %v863 = vunpack.c.l.s4 1983009808
        %v864 = vunpack.c.0.s8 %v863
        %v865 = vlaneseq
        %v866 = vshrl.u32 %v865, 7
        %v867 = vsub.s32 %v864, %v866
        %v868 = vrot.slane %v860, %v867
        %v870 = vunpack.c.l.s4 1983009808
        %v871 = vunpack.c.0.s8 %v870
        %v872 = vlaneseq
        %v873 = vshrl.u32 %v872, 7
        %v874 = vsub.s32 %v871, %v873
        %v875 = vrot.slane %v861, %v874
        %v876 = vcombine.low %v852, %v858
        %v877 = vcombine.high %v852, %v858
        %v879 = vunpack.c.l.s4 1983009808
        %v880 = vunpack.c.0.s8 %v879
        %v881 = vlaneseq
        %v882 = vshrl.u32 %v881, 7
        %v883 = vsub.s32 %v880, %v882
        %v884 = vrot.slane %v876, %v883
        %v886 = vunpack.c.l.s4 1983009808
        %v887 = vunpack.c.0.s8 %v886
        %v888 = vlaneseq
        %v889 = vshrl.u32 %v888, 7
        %v890 = vsub.s32 %v887, %v889
        %v891 = vrot.slane %v877, %v890
        %v892 = vcombine.low %v868, %v884
        %v893 = vcombine.high %v868, %v884
        %v895 = vunpack.c.l.s4 1934713408
        %v896 = vunpack.c.0.s8 %v895
        %v897 = vlaneseq
        %v898 = vshrl.u32 %v897, 7
        %v899 = vsub.s32 %v896, %v898
        %v900 = vrot.slane %v892, %v899
        %v902 = vunpack.c.l.s4 1934713408
        %v903 = vunpack.c.0.s8 %v902
        %v904 = vlaneseq
        %v905 = vshrl.u32 %v904, 7
        %v906 = vsub.s32 %v903, %v905
        %v907 = vrot.slane %v893, %v906
        %v908 = vcombine.low %v875, %v891
        %v909 = vcombine.high %v875, %v891
        %v911 = vunpack.c.l.s4 1934713408
        %v912 = vunpack.c.0.s8 %v911
        %v913 = vlaneseq
        %v914 = vshrl.u32 %v913, 7
        %v915 = vsub.s32 %v912, %v914
        %v916 = vrot.slane %v908, %v915
        %v918 = vunpack.c.l.s4 1934713408
        %v919 = vunpack.c.0.s8 %v918
        %v920 = vlaneseq
        %v921 = vshrl.u32 %v920, 7
        %v922 = vsub.s32 %v919, %v921
        %v923 = vrot.slane %v909, %v922
        %v924 = vcombine.high %v900, 0.0
        %v925 = vcombine.high %v907, 0.0
        %v926 = vcombine.high %v916, 0.0
        %v927 = vcombine.high %v923, 0.0
        %929 = vrot.lane.b32.xlu0 %v766, 120
        %v930 = vpop.permute.xlu0 %929
        %932 = vrot.lane.b32.xlu0 %v766, 112
        %v933 = vpop.permute.xlu0 %932
        %935 = vrot.lane.b32.xlu0 %v766, 104
        %v936 = vpop.permute.xlu0 %935
        %v938 = vcombine.low %v766, %v933
        %v939 = vcombine.high %v766, %v933
        %v941 = vunpack.c.l.s4 1983009808
        %v942 = vunpack.c.0.s8 %v941
        %v943 = vlaneseq
        %v944 = vshrl.u32 %v943, 7
        %v945 = vsub.s32 %v942, %v944
        %v946 = vrot.slane %v938, %v945
        %v948 = vunpack.c.l.s4 1983009808
        %v949 = vunpack.c.0.s8 %v948
        %v950 = vlaneseq
        %v951 = vshrl.u32 %v950, 7
        %v952 = vsub.s32 %v949, %v951
        %v953 = vrot.slane %v939, %v952
        %v954 = vcombine.low %v930, %v936
        %v955 = vcombine.high %v930, %v936
        %v957 = vunpack.c.l.s4 1983009808
        %v958 = vunpack.c.0.s8 %v957
        %v959 = vlaneseq
        %v960 = vshrl.u32 %v959, 7
        %v961 = vsub.s32 %v958, %v960
        %v962 = vrot.slane %v954, %v961
        %v964 = vunpack.c.l.s4 1983009808
        %v965 = vunpack.c.0.s8 %v964
        %v966 = vlaneseq
        %v967 = vshrl.u32 %v966, 7
        %v968 = vsub.s32 %v965, %v967
        %v969 = vrot.slane %v955, %v968
        %v970 = vcombine.low %v946, %v962
        %v971 = vcombine.high %v946, %v962
        %v973 = vunpack.c.l.s4 1934713408
        %v974 = vunpack.c.0.s8 %v973
        %v975 = vlaneseq
        %v976 = vshrl.u32 %v975, 7
        %v977 = vsub.s32 %v974, %v976
        %v978 = vrot.slane %v970, %v977
        %v980 = vunpack.c.l.s4 1934713408
        %v981 = vunpack.c.0.s8 %v980
        %v982 = vlaneseq
        %v983 = vshrl.u32 %v982, 7
        %v984 = vsub.s32 %v981, %v983
        %v985 = vrot.slane %v971, %v984
        %v986 = vcombine.low %v953, %v969
        %v987 = vcombine.high %v953, %v969
        %v989 = vunpack.c.l.s4 1934713408
        %v990 = vunpack.c.0.s8 %v989
        %v991 = vlaneseq
        %v992 = vshrl.u32 %v991, 7
        %v993 = vsub.s32 %v990, %v992
        %v994 = vrot.slane %v986, %v993
        %v996 = vunpack.c.l.s4 1934713408
        %v997 = vunpack.c.0.s8 %v996
        %v998 = vlaneseq
        %v999 = vshrl.u32 %v998, 7
        %v1000 = vsub.s32 %v997, %v999
        %v1001 = vrot.slane %v987, %v1000
        %v1002 = vcombine.high %v978, 0.0
        %v1003 = vcombine.high %v985, 0.0
        %v1004 = vcombine.high %v994, 0.0
        %v1005 = vcombine.high %v1001, 0.0
        %v1006 = vcombine.low %v822, %v829
        %v1008 = vunpack.c.l.s4 1983009808
        %v1009 = vunpack.c.0.s8 %v1008
        %v1010 = vlaneseq
        %v1011 = vshrl.u32 %v1010, 7
        %v1012 = vsub.s32 %v1009, %v1011
        %v1013 = vrot.slane %v1006, %v1012
        %v1014 = vcombine.low %v846, %v847
        %v1016 = vunpack.c.l.s4 1983009808
        %v1017 = vunpack.c.0.s8 %v1016
        %v1018 = vlaneseq
        %v1019 = vshrl.u32 %v1018, 7
        %v1020 = vsub.s32 %v1017, %v1019
        %v1021 = vrot.slane %v1014, %v1020
        %v1022 = vcombine.low %v838, %v845
        %v1024 = vunpack.c.l.s4 1983009808
        %v1025 = vunpack.c.0.s8 %v1024
        %v1026 = vlaneseq
        %v1027 = vshrl.u32 %v1026, 7
        %v1028 = vsub.s32 %v1025, %v1027
        %v1029 = vrot.slane %v1022, %v1028
        %v1030 = vcombine.low %v848, %v849
        %v1032 = vunpack.c.l.s4 1983009808
        %v1033 = vunpack.c.0.s8 %v1032
        %v1034 = vlaneseq
        %v1035 = vshrl.u32 %v1034, 7
        %v1036 = vsub.s32 %v1033, %v1035
        %v1037 = vrot.slane %v1030, %v1036
        %v1038 = vcombine.low %v1013, %v1021
        %v1039 = vcombine.high %v1013, %v1021
        %v1041 = vunpack.c.l.s4 1934713408
        %v1042 = vunpack.c.0.s8 %v1041
        %v1043 = vlaneseq
        %v1044 = vshrl.u32 %v1043, 7
        %v1045 = vsub.s32 %v1042, %v1044
        %v1046 = vrot.slane %v1038, %v1045
        %v1048 = vunpack.c.l.s4 1934713408
        %v1049 = vunpack.c.0.s8 %v1048
        %v1050 = vlaneseq
        %v1051 = vshrl.u32 %v1050, 7
        %v1052 = vsub.s32 %v1049, %v1051
        %v1053 = vrot.slane %v1039, %v1052
        %v1054 = vcombine.low %v1029, %v1037
        %v1055 = vcombine.high %v1029, %v1037
        %v1057 = vunpack.c.l.s4 1934713408
        %v1058 = vunpack.c.0.s8 %v1057
        %v1059 = vlaneseq
        %v1060 = vshrl.u32 %v1059, 7
        %v1061 = vsub.s32 %v1058, %v1060
        %v1062 = vrot.slane %v1054, %v1061
        %v1064 = vunpack.c.l.s4 1934713408
        %v1065 = vunpack.c.0.s8 %v1064
        %v1066 = vlaneseq
        %v1067 = vshrl.u32 %v1066, 7
        %v1068 = vsub.s32 %v1065, %v1067
        %v1069 = vrot.slane %v1055, %v1068
        %v1070 = vcombine.low %v1046, %v1062
        %v1071 = vcombine.high %v1046, %v1062
        %v1072 = vcombine.low %v1053, %v1069
        %v1073 = vcombine.high %v1053, %v1069
        %v1074 = vpack.c.bf16 %v1070, %v1070
        %v1075 = vpack.c.bf16 %v1071, %v1071
        %v1076 = vpack.c.bf16 %v1072, %v1072
        %v1077 = vpack.c.bf16 %v1073, %v1073
        %v1078 = vcombine.low %v900, %v907
        %v1080 = vunpack.c.l.s4 1983009808
        %v1081 = vunpack.c.0.s8 %v1080
        %v1082 = vlaneseq
        %v1083 = vshrl.u32 %v1082, 7
        %v1084 = vsub.s32 %v1081, %v1083
        %v1085 = vrot.slane %v1078, %v1084
        %v1086 = vcombine.low %v924, %v925
        %v1088 = vunpack.c.l.s4 1983009808
        %v1089 = vunpack.c.0.s8 %v1088
        %v1090 = vlaneseq
        %v1091 = vshrl.u32 %v1090, 7
        %v1092 = vsub.s32 %v1089, %v1091
        %v1093 = vrot.slane %v1086, %v1092
        %v1094 = vcombine.low %v916, %v923
        %v1096 = vunpack.c.l.s4 1983009808
        %v1097 = vunpack.c.0.s8 %v1096
        %v1098 = vlaneseq
        %v1099 = vshrl.u32 %v1098, 7
        %v1100 = vsub.s32 %v1097, %v1099
        %v1101 = vrot.slane %v1094, %v1100
        %v1102 = vcombine.low %v926, %v927
        %v1104 = vunpack.c.l.s4 1983009808
        %v1105 = vunpack.c.0.s8 %v1104
        %v1106 = vlaneseq
        %v1107 = vshrl.u32 %v1106, 7
        %v1108 = vsub.s32 %v1105, %v1107
        %v1109 = vrot.slane %v1102, %v1108
        %v1110 = vcombine.low %v1085, %v1093
        %v1111 = vcombine.high %v1085, %v1093
        %v1113 = vunpack.c.l.s4 1934713408
        %v1114 = vunpack.c.0.s8 %v1113
        %v1115 = vlaneseq
        %v1116 = vshrl.u32 %v1115, 7
        %v1117 = vsub.s32 %v1114, %v1116
        %v1118 = vrot.slane %v1110, %v1117
        %v1120 = vunpack.c.l.s4 1934713408
        %v1121 = vunpack.c.0.s8 %v1120
        %v1122 = vlaneseq
        %v1123 = vshrl.u32 %v1122, 7
        %v1124 = vsub.s32 %v1121, %v1123
        %v1125 = vrot.slane %v1111, %v1124
        %v1126 = vcombine.low %v1101, %v1109
        %v1127 = vcombine.high %v1101, %v1109
        %v1129 = vunpack.c.l.s4 1934713408
        %v1130 = vunpack.c.0.s8 %v1129
        %v1131 = vlaneseq
        %v1132 = vshrl.u32 %v1131, 7
        %v1133 = vsub.s32 %v1130, %v1132
        %v1134 = vrot.slane %v1126, %v1133
        %v1136 = vunpack.c.l.s4 1934713408
        %v1137 = vunpack.c.0.s8 %v1136
        %v1138 = vlaneseq
        %v1139 = vshrl.u32 %v1138, 7
        %v1140 = vsub.s32 %v1137, %v1139
        %v1141 = vrot.slane %v1127, %v1140
        %v1142 = vcombine.low %v1118, %v1134
        %v1143 = vcombine.high %v1118, %v1134
        %v1144 = vcombine.low %v1125, %v1141
        %v1145 = vcombine.high %v1125, %v1141
        %v1146 = vpack.c.bf16 %v1142, %v1142
        %v1147 = vpack.c.bf16 %v1143, %v1143
        %v1148 = vpack.c.bf16 %v1144, %v1144
        %v1149 = vpack.c.bf16 %v1145, %v1145
        %v1150 = vcombine.low %v978, %v985
        %v1152 = vunpack.c.l.s4 1983009808
        %v1153 = vunpack.c.0.s8 %v1152
        %v1154 = vlaneseq
        %v1155 = vshrl.u32 %v1154, 7
        %v1156 = vsub.s32 %v1153, %v1155
        %v1157 = vrot.slane %v1150, %v1156
        %v1158 = vcombine.low %v1002, %v1003
        %v1160 = vunpack.c.l.s4 1983009808
        %v1161 = vunpack.c.0.s8 %v1160
        %v1162 = vlaneseq
        %v1163 = vshrl.u32 %v1162, 7
        %v1164 = vsub.s32 %v1161, %v1163
        %v1165 = vrot.slane %v1158, %v1164
        %v1166 = vcombine.low %v994, %v1001
        %v1168 = vunpack.c.l.s4 1983009808
        %v1169 = vunpack.c.0.s8 %v1168
        %v1170 = vlaneseq
        %v1171 = vshrl.u32 %v1170, 7
        %v1172 = vsub.s32 %v1169, %v1171
        %v1173 = vrot.slane %v1166, %v1172
        %v1174 = vcombine.low %v1004, %v1005
        %v1176 = vunpack.c.l.s4 1983009808
        %v1177 = vunpack.c.0.s8 %v1176
        %v1178 = vlaneseq
        %v1179 = vshrl.u32 %v1178, 7
        %v1180 = vsub.s32 %v1177, %v1179
        %v1181 = vrot.slane %v1174, %v1180
        %v1182 = vcombine.low %v1157, %v1165
        %v1183 = vcombine.high %v1157, %v1165
        %v1185 = vunpack.c.l.s4 1934713408
        %v1186 = vunpack.c.0.s8 %v1185
        %v1187 = vlaneseq
        %v1188 = vshrl.u32 %v1187, 7
        %v1189 = vsub.s32 %v1186, %v1188
        %v1190 = vrot.slane %v1182, %v1189
        %v1192 = vunpack.c.l.s4 1934713408
        %v1193 = vunpack.c.0.s8 %v1192
        %v1194 = vlaneseq
        %v1195 = vshrl.u32 %v1194, 7
        %v1196 = vsub.s32 %v1193, %v1195
        %v1197 = vrot.slane %v1183, %v1196
        %v1198 = vcombine.low %v1173, %v1181
        %v1199 = vcombine.high %v1173, %v1181
        %v1201 = vunpack.c.l.s4 1934713408
        %v1202 = vunpack.c.0.s8 %v1201
        %v1203 = vlaneseq
        %v1204 = vshrl.u32 %v1203, 7
        %v1205 = vsub.s32 %v1202, %v1204
        %v1206 = vrot.slane %v1198, %v1205
        %v1208 = vunpack.c.l.s4 1934713408
        %v1209 = vunpack.c.0.s8 %v1208
        %v1210 = vlaneseq
        %v1211 = vshrl.u32 %v1210, 7
        %v1212 = vsub.s32 %v1209, %v1211
        %v1213 = vrot.slane %v1199, %v1212
        %v1214 = vcombine.low %v1190, %v1206
        %v1215 = vcombine.high %v1190, %v1206
        %v1216 = vcombine.low %v1197, %v1213
        %v1217 = vcombine.high %v1197, %v1213
        %v1218 = vpack.c.bf16 %v1214, %v1214
        %v1219 = vpack.c.bf16 %v1215, %v1215
        %v1220 = vpack.c.bf16 %v1216, %v1216
        %v1221 = vpack.c.bf16 %v1217, %v1217
        %v1223 = vlaneseq
        %v1224 = vshrl.u32 %v1223, 7
        %v1225 = vsub.s32 0, %v1224
        %v1226 = vrot.slane %v583, %v1225
        %vm1228 = vcmask 64512
        %v1230 = vsel %vm1228, %v1074, 0
        %v1233 = vsel %vm1228, %v1146, 0
        %1235 = vmatprep.subr.bf16.mxu0 0
        %1236 = vmatpush1.bf16.xpose.msra.mxu0 %v1233
        %1237 = vmatprep.subr.bf16.mxu0 0
        %1238 = vmatpush1.bf16.xpose.msra.mxu0 0
        %1239 = vmatprep.subr.bf16.mxu0 0
        %1240 = vmatpush1.bf16.xpose.msra.mxu0 0
        %1241 = vmatprep.subr.bf16.mxu0 0
        %1242 = vmatpush1.bf16.xpose.msra.mxu0 0
        %1243 = vmatprep.subr.bf16.mxu0 0
        %1244 = vmatpush1.bf16.xpose.msra.mxu0 0
        %1245 = vmatprep.subr.bf16.mxu0 0
        %1246 = vmatpush1.bf16.xpose.msra.mxu0 0
        %1247 = vmatprep.subr.bf16.mxu0 0
        %1248 = vmatpush1.bf16.xpose.msra.mxu0 0
        %1249 = vmatprep.subr.bf16.mxu0 0
        %1250 = vmatpush1.bf16.xpose.msra.mxu0 0
        %1251 = vmatprep.subr.bf16.mxu0 0
        %1252 = vmatpush1.bf16.xpose.msra.mxu0 0
        %1253 = vmatprep.subr.bf16.mxu0 0
        %1254 = vmatpush1.bf16.xpose.msra.mxu0 0
        %1255 = vmatprep.subr.bf16.mxu0 0
        %1256 = vmatpush1.bf16.xpose.msra.mxu0 0
        %1257 = vmatprep.subr.bf16.mxu0 0
        %1258 = vmatpush1.bf16.xpose.msra.mxu0 0
        %1259 = vmatprep.subr.bf16.mxu0 0
        %1260 = vmatpush1.bf16.xpose.msra.mxu0 0
        %1261 = vmatprep.subr.bf16.mxu0 0
        %1262 = vmatpush1.bf16.xpose.msra.mxu0 0
        %1263 = vmatprep.subr.bf16.mxu0 0
        %1264 = vmatpush1.bf16.xpose.msra.mxu0 0
        %1265 = vmatprep.subr.bf16.mxu0 0
        %1266 = vmatpush1.bf16.xpose.msra.mxu0 0
        %1267 = vmatprep.mubr.bf16.mxu0 0
        %1268 = vmatmul.mubr.bf16.gmra.mrb[0].mxu0 %v1230
        %v1269 = vpop.f32.mrb[0].mxu0
        %v1270 = vadd.f32 %v1226, %v1269
        %v1271 = vpop.f32.mrb[0].mxu0
        %v1272 = vpop.f32.mrb[0].mxu0
        %v1273 = vpop.f32.mrb[0].mxu0
        %1274 = vdwg.mxu0
        %v1276 = vsel %vm1228, %v1075, 0
        %v1279 = vsel %vm1228, %v1147, 0
        %1281 = vmatprep.subr.bf16.mxu0 0
        %1282 = vmatpush1.bf16.xpose.msra.mxu0 %v1279
        %1283 = vmatprep.subr.bf16.mxu0 0
        %1284 = vmatpush1.bf16.xpose.msra.mxu0 0
        %1285 = vmatprep.subr.bf16.mxu0 0
        %1286 = vmatpush1.bf16.xpose.msra.mxu0 0
        %1287 = vmatprep.subr.bf16.mxu0 0
        %1288 = vmatpush1.bf16.xpose.msra.mxu0 0
        %1289 = vmatprep.subr.bf16.mxu0 0
        %1290 = vmatpush1.bf16.xpose.msra.mxu0 0
        %1291 = vmatprep.subr.bf16.mxu0 0
        %1292 = vmatpush1.bf16.xpose.msra.mxu0 0
        %1293 = vmatprep.subr.bf16.mxu0 0
        %1294 = vmatpush1.bf16.xpose.msra.mxu0 0
        %1295 = vmatprep.subr.bf16.mxu0 0
        %1296 = vmatpush1.bf16.xpose.msra.mxu0 0
        %1297 = vmatprep.subr.bf16.mxu0 0
        %1298 = vmatpush1.bf16.xpose.msra.mxu0 0
        %1299 = vmatprep.subr.bf16.mxu0 0
        %1300 = vmatpush1.bf16.xpose.msra.mxu0 0
        %1301 = vmatprep.subr.bf16.mxu0 0
        %1302 = vmatpush1.bf16.xpose.msra.mxu0 0
        %1303 = vmatprep.subr.bf16.mxu0 0
        %1304 = vmatpush1.bf16.xpose.msra.mxu0 0
        %1305 = vmatprep.subr.bf16.mxu0 0
        %1306 = vmatpush1.bf16.xpose.msra.mxu0 0
        %1307 = vmatprep.subr.bf16.mxu0 0
        %1308 = vmatpush1.bf16.xpose.msra.mxu0 0
        %1309 = vmatprep.subr.bf16.mxu0 0
        %1310 = vmatpush1.bf16.xpose.msra.mxu0 0
        %1311 = vmatprep.subr.bf16.mxu0 0
        %1312 = vmatpush1.bf16.xpose.msra.mxu0 0
        %1313 = vmatprep.mubr.bf16.mxu0 0
        %1314 = vmatmul.mubr.bf16.gmra.mrb[0].mxu0 %v1276
        %v1315 = vpop.f32.mrb[0].mxu0
        %v1316 = vadd.f32 %v1226, %v1315
        %v1317 = vpop.f32.mrb[0].mxu0
        %v1318 = vpop.f32.mrb[0].mxu0
        %v1319 = vpop.f32.mrb[0].mxu0
        %1320 = vdwg.mxu0
        %v1322 = vsel %vm1228, %v1076, 0
        %v1325 = vsel %vm1228, %v1148, 0
        %1327 = vmatprep.subr.bf16.mxu0 0
        %1328 = vmatpush1.bf16.xpose.msra.mxu0 %v1325
        %1329 = vmatprep.subr.bf16.mxu0 0
        %1330 = vmatpush1.bf16.xpose.msra.mxu0 0
        %1331 = vmatprep.subr.bf16.mxu0 0
        %1332 = vmatpush1.bf16.xpose.msra.mxu0 0
        %1333 = vmatprep.subr.bf16.mxu0 0
        %1334 = vmatpush1.bf16.xpose.msra.mxu0 0
        %1335 = vmatprep.subr.bf16.mxu0 0
        %1336 = vmatpush1.bf16.xpose.msra.mxu0 0
        %1337 = vmatprep.subr.bf16.mxu0 0
        %1338 = vmatpush1.bf16.xpose.msra.mxu0 0
        %1339 = vmatprep.subr.bf16.mxu0 0
        %1340 = vmatpush1.bf16.xpose.msra.mxu0 0
        %1341 = vmatprep.subr.bf16.mxu0 0
        %1342 = vmatpush1.bf16.xpose.msra.mxu0 0
        %1343 = vmatprep.subr.bf16.mxu0 0
        %1344 = vmatpush1.bf16.xpose.msra.mxu0 0
        %1345 = vmatprep.subr.bf16.mxu0 0
        %1346 = vmatpush1.bf16.xpose.msra.mxu0 0
        %1347 = vmatprep.subr.bf16.mxu0 0
        %1348 = vmatpush1.bf16.xpose.msra.mxu0 0
        %1349 = vmatprep.subr.bf16.mxu0 0
        %1350 = vmatpush1.bf16.xpose.msra.mxu0 0
        %1351 = vmatprep.subr.bf16.mxu0 0
        %1352 = vmatpush1.bf16.xpose.msra.mxu0 0
        %1353 = vmatprep.subr.bf16.mxu0 0
        %1354 = vmatpush1.bf16.xpose.msra.mxu0 0
        %1355 = vmatprep.subr.bf16.mxu0 0
        %1356 = vmatpush1.bf16.xpose.msra.mxu0 0
        %1357 = vmatprep.subr.bf16.mxu0 0
        %1358 = vmatpush1.bf16.xpose.msra.mxu0 0
        %1359 = vmatprep.mubr.bf16.mxu0 0
        %1360 = vmatmul.mubr.bf16.gmra.mrb[0].mxu0 %v1322
        %v1361 = vpop.f32.mrb[0].mxu0
        %v1362 = vadd.f32 %v1226, %v1361
        %v1363 = vpop.f32.mrb[0].mxu0
        %v1364 = vpop.f32.mrb[0].mxu0
        %v1365 = vpop.f32.mrb[0].mxu0
        %1366 = vdwg.mxu0
        %v1368 = vsel %vm1228, %v1077, 0
        %v1371 = vsel %vm1228, %v1149, 0
        %1373 = vmatprep.subr.bf16.mxu0 0
        %1374 = vmatpush1.bf16.xpose.msra.mxu0 %v1371
        %1375 = vmatprep.subr.bf16.mxu0 0
        %1376 = vmatpush1.bf16.xpose.msra.mxu0 0
        %1377 = vmatprep.subr.bf16.mxu0 0
        %1378 = vmatpush1.bf16.xpose.msra.mxu0 0
        %1379 = vmatprep.subr.bf16.mxu0 0
        %1380 = vmatpush1.bf16.xpose.msra.mxu0 0
        %1381 = vmatprep.subr.bf16.mxu0 0
        %1382 = vmatpush1.bf16.xpose.msra.mxu0 0
        %1383 = vmatprep.subr.bf16.mxu0 0
        %1384 = vmatpush1.bf16.xpose.msra.mxu0 0
        %1385 = vmatprep.subr.bf16.mxu0 0
        %1386 = vmatpush1.bf16.xpose.msra.mxu0 0
        %1387 = vmatprep.subr.bf16.mxu0 0
        %1388 = vmatpush1.bf16.xpose.msra.mxu0 0
        %1389 = vmatprep.subr.bf16.mxu0 0
        %1390 = vmatpush1.bf16.xpose.msra.mxu0 0
        %1391 = vmatprep.subr.bf16.mxu0 0
        %1392 = vmatpush1.bf16.xpose.msra.mxu0 0
        %1393 = vmatprep.subr.bf16.mxu0 0
        %1394 = vmatpush1.bf16.xpose.msra.mxu0 0
        %1395 = vmatprep.subr.bf16.mxu0 0
        %1396 = vmatpush1.bf16.xpose.msra.mxu0 0
        %1397 = vmatprep.subr.bf16.mxu0 0
        %1398 = vmatpush1.bf16.xpose.msra.mxu0 0
        %1399 = vmatprep.subr.bf16.mxu0 0
        %1400 = vmatpush1.bf16.xpose.msra.mxu0 0
        %1401 = vmatprep.subr.bf16.mxu0 0
        %1402 = vmatpush1.bf16.xpose.msra.mxu0 0
        %1403 = vmatprep.subr.bf16.mxu0 0
        %1404 = vmatpush1.bf16.xpose.msra.mxu0 0
        %1405 = vmatprep.mubr.bf16.mxu0 0
        %1406 = vmatmul.mubr.bf16.gmra.mrb[0].mxu0 %v1368
        %v1407 = vpop.f32.mrb[0].mxu0
        %v1408 = vadd.f32 %v1226, %v1407
        %v1409 = vpop.f32.mrb[0].mxu0
        %v1410 = vpop.f32.mrb[0].mxu0
        %v1411 = vpop.f32.mrb[0].mxu0
        %1412 = vdwg.mxu0
        %v1413 = vsel %vm1228, %v1270, -inf
        %1414 = vmax.xlane.f32.xlu0 %v1413
        %v1415 = vpop.xlane.xlu0 %1414
        %v1416 = vsel %vm1228, %v1316, -inf
        %1417 = vmax.xlane.f32.xlu0 %v1416
        %v1418 = vpop.xlane.xlu0 %1417
        %v1419 = vsel %vm1228, %v1362, -inf
        %1420 = vmax.xlane.f32.xlu0 %v1419
        %v1421 = vpop.xlane.xlu0 %1420
        %v1422 = vsel %vm1228, %v1408, -inf
        %1423 = vmax.xlane.f32.xlu0 %v1422
        %v1424 = vpop.xlane.xlu0 %1423
        %v1425 = vmax.f32 %v1415, -1e+30
        %v1426 = vmax.f32 %v1418, -1e+30
        %v1427 = vmax.f32 %v1421, -1e+30
        %v1428 = vmax.f32 %v1424, -1e+30
        %v1429 = vsub.f32 -1e+30, %v1425
        %v1430 = vsub.f32 -1e+30, %v1426
        %v1431 = vsub.f32 -1e+30, %v1427
        %v1432 = vsub.f32 -1e+30, %v1428
        %v1433 = vmul.f32 %v1429, 1.442695
        %v1434 = vpow.pop %v1433
        %v1435 = vmul.f32 %v1430, 1.442695
        %v1436 = vpow.pop %v1435
        %v1437 = vmul.f32 %v1431, 1.442695
        %v1438 = vpow.pop %v1437
        %v1439 = vmul.f32 %v1432, 1.442695
        %v1440 = vpow.pop %v1439
        %v1441 = vsub.f32 %v1270, %v1425
        %v1442 = vsub.f32 %v1316, %v1426
        %v1443 = vsub.f32 %v1362, %v1427
        %v1444 = vsub.f32 %v1408, %v1428
        %v1445 = vmul.f32 %v1441, 1.442695
        %v1446 = vpow.pop %v1445
        %v1447 = vmul.f32 %v1442, 1.442695
        %v1448 = vpow.pop %v1447
        %v1449 = vmul.f32 %v1443, 1.442695
        %v1450 = vpow.pop %v1449
        %v1451 = vmul.f32 %v1444, 1.442695
        %v1452 = vpow.pop %v1451
        %v1453 = vmul.f32 %v1434, 0.0
        %v1454 = vmul.f32 %v1436, 0.0
        %v1455 = vmul.f32 %v1438, 0.0
        %v1456 = vmul.f32 %v1440, 0.0
        %v1457 = vsel %vm1228, %v1446, 0.0
        %1458 = vadd.xlane.f32.xlu0 %v1457
        %v1459 = vpop.xlane.xlu0 %1458
        %v1460 = vsel %vm1228, %v1448, 0.0
        %1461 = vadd.xlane.f32.xlu0 %v1460
        %v1462 = vpop.xlane.xlu0 %1461
        %v1463 = vsel %vm1228, %v1450, 0.0
        %1464 = vadd.xlane.f32.xlu0 %v1463
        %v1465 = vpop.xlane.xlu0 %1464
        %v1466 = vsel %vm1228, %v1452, 0.0
        %1467 = vadd.xlane.f32.xlu0 %v1466
        %v1468 = vpop.xlane.xlu0 %1467
        %v1469 = vadd.f32 %v1453, %v1459
        %v1470 = vadd.f32 %v1454, %v1462
        %v1471 = vadd.f32 %v1455, %v1465
        %v1472 = vadd.f32 %v1456, %v1468
        %v1473 = vpack.c.bf16 %v1446, %v1446
        %v1474 = vpack.c.bf16 %v1448, %v1448
        %v1475 = vpack.c.bf16 %v1450, %v1450
        %v1476 = vpack.c.bf16 %v1452, %v1452
        %v1478 = vsel %vm1228, %v1473, 0
        %vm1480 = vcmask 1043456
        %v1482 = vsel %vm1480, %v1218, 0
        %1484 = vmatprep.subr.bf16.mxu0 0
        %1485 = vmatpush1.bf16.msra.mxu0 %v1482
        %1486 = vmatprep.subr.bf16.mxu0 0
        %1487 = vmatpush1.bf16.msra.mxu0 0
        %1488 = vmatprep.subr.bf16.mxu0 0
        %1489 = vmatpush1.bf16.msra.mxu0 0
        %1490 = vmatprep.subr.bf16.mxu0 0
        %1491 = vmatpush1.bf16.msra.mxu0 0
        %1492 = vmatprep.subr.bf16.mxu0 0
        %1493 = vmatpush1.bf16.msra.mxu0 0
        %1494 = vmatprep.subr.bf16.mxu0 0
        %1495 = vmatpush1.bf16.msra.mxu0 0
        %1496 = vmatprep.subr.bf16.mxu0 0
        %1497 = vmatpush1.bf16.msra.mxu0 0
        %1498 = vmatprep.subr.bf16.mxu0 0
        %1499 = vmatpush1.bf16.msra.mxu0 0
        %1500 = vmatprep.subr.bf16.mxu0 0
        %1501 = vmatpush1.bf16.msra.mxu0 0
        %1502 = vmatprep.subr.bf16.mxu0 0
        %1503 = vmatpush1.bf16.msra.mxu0 0
        %1504 = vmatprep.subr.bf16.mxu0 0
        %1505 = vmatpush1.bf16.msra.mxu0 0
        %1506 = vmatprep.subr.bf16.mxu0 0
        %1507 = vmatpush1.bf16.msra.mxu0 0
        %1508 = vmatprep.subr.bf16.mxu0 0
        %1509 = vmatpush1.bf16.msra.mxu0 0
        %1510 = vmatprep.subr.bf16.mxu0 0
        %1511 = vmatpush1.bf16.msra.mxu0 0
        %1512 = vmatprep.subr.bf16.mxu0 0
        %1513 = vmatpush1.bf16.msra.mxu0 0
        %1514 = vmatprep.subr.bf16.mxu0 0
        %1515 = vmatpush1.bf16.msra.mxu0 0
        %1516 = vmatprep.mubr.bf16.mxu0 0
        %1517 = vmatmul.mubr.bf16.gmra.mrb[0].mxu0 %v1478
        %v1518 = vpop.f32.mrb[0].mxu0
        %v1519 = vadd.f32 0.0, %v1518
        %v1520 = vpop.f32.mrb[0].mxu0
        %v1521 = vpop.f32.mrb[0].mxu0
        %v1522 = vpop.f32.mrb[0].mxu0
        %1523 = vdwg.mxu0
        %v1525 = vsel %vm1228, %v1474, 0
        %v1528 = vsel %vm1480, %v1219, 0
        %1530 = vmatprep.subr.bf16.mxu0 0
        %1531 = vmatpush1.bf16.msra.mxu0 %v1528
        %1532 = vmatprep.subr.bf16.mxu0 0
        %1533 = vmatpush1.bf16.msra.mxu0 0
        %1534 = vmatprep.subr.bf16.mxu0 0
        %1535 = vmatpush1.bf16.msra.mxu0 0
        %1536 = vmatprep.subr.bf16.mxu0 0
        %1537 = vmatpush1.bf16.msra.mxu0 0
        %1538 = vmatprep.subr.bf16.mxu0 0
        %1539 = vmatpush1.bf16.msra.mxu0 0
        %1540 = vmatprep.subr.bf16.mxu0 0
        %1541 = vmatpush1.bf16.msra.mxu0 0
        %1542 = vmatprep.subr.bf16.mxu0 0
        %1543 = vmatpush1.bf16.msra.mxu0 0
        %1544 = vmatprep.subr.bf16.mxu0 0
        %1545 = vmatpush1.bf16.msra.mxu0 0
        %1546 = vmatprep.subr.bf16.mxu0 0
        %1547 = vmatpush1.bf16.msra.mxu0 0
        %1548 = vmatprep.subr.bf16.mxu0 0
        %1549 = vmatpush1.bf16.msra.mxu0 0
        %1550 = vmatprep.subr.bf16.mxu0 0
        %1551 = vmatpush1.bf16.msra.mxu0 0
        %1552 = vmatprep.subr.bf16.mxu0 0
        %1553 = vmatpush1.bf16.msra.mxu0 0
        %1554 = vmatprep.subr.bf16.mxu0 0
        %1555 = vmatpush1.bf16.msra.mxu0 0
        %1556 = vmatprep.subr.bf16.mxu0 0
        %1557 = vmatpush1.bf16.msra.mxu0 0
        %1558 = vmatprep.subr.bf16.mxu0 0
        %1559 = vmatpush1.bf16.msra.mxu0 0
        %1560 = vmatprep.subr.bf16.mxu0 0
        %1561 = vmatpush1.bf16.msra.mxu0 0
        %1562 = vmatprep.mubr.bf16.mxu0 0
        %1563 = vmatmul.mubr.bf16.gmra.mrb[0].mxu0 %v1525
        %v1564 = vpop.f32.mrb[0].mxu0
        %v1565 = vadd.f32 0.0, %v1564
        %v1566 = vpop.f32.mrb[0].mxu0
        %v1567 = vpop.f32.mrb[0].mxu0
        %v1568 = vpop.f32.mrb[0].mxu0
        %1569 = vdwg.mxu0
        %v1571 = vsel %vm1228, %v1475, 0
        %v1574 = vsel %vm1480, %v1220, 0
        %1576 = vmatprep.subr.bf16.mxu0 0
        %1577 = vmatpush1.bf16.msra.mxu0 %v1574
        %1578 = vmatprep.subr.bf16.mxu0 0
        %1579 = vmatpush1.bf16.msra.mxu0 0
        %1580 = vmatprep.subr.bf16.mxu0 0
        %1581 = vmatpush1.bf16.msra.mxu0 0
        %1582 = vmatprep.subr.bf16.mxu0 0
        %1583 = vmatpush1.bf16.msra.mxu0 0
        %1584 = vmatprep.subr.bf16.mxu0 0
        %1585 = vmatpush1.bf16.msra.mxu0 0
        %1586 = vmatprep.subr.bf16.mxu0 0
        %1587 = vmatpush1.bf16.msra.mxu0 0
        %1588 = vmatprep.subr.bf16.mxu0 0
        %1589 = vmatpush1.bf16.msra.mxu0 0
        %1590 = vmatprep.subr.bf16.mxu0 0
        %1591 = vmatpush1.bf16.msra.mxu0 0
        %1592 = vmatprep.subr.bf16.mxu0 0
        %1593 = vmatpush1.bf16.msra.mxu0 0
        %1594 = vmatprep.subr.bf16.mxu0 0
        %1595 = vmatpush1.bf16.msra.mxu0 0
        %1596 = vmatprep.subr.bf16.mxu0 0
        %1597 = vmatpush1.bf16.msra.mxu0 0
        %1598 = vmatprep.subr.bf16.mxu0 0
        %1599 = vmatpush1.bf16.msra.mxu0 0
        %1600 = vmatprep.subr.bf16.mxu0 0
        %1601 = vmatpush1.bf16.msra.mxu0 0
        %1602 = vmatprep.subr.bf16.mxu0 0
        %1603 = vmatpush1.bf16.msra.mxu0 0
        %1604 = vmatprep.subr.bf16.mxu0 0
        %1605 = vmatpush1.bf16.msra.mxu0 0
        %1606 = vmatprep.subr.bf16.mxu0 0
        %1607 = vmatpush1.bf16.msra.mxu0 0
        %1608 = vmatprep.mubr.bf16.mxu0 0
        %1609 = vmatmul.mubr.bf16.gmra.mrb[0].mxu0 %v1571
        %v1610 = vpop.f32.mrb[0].mxu0
        %v1611 = vadd.f32 0.0, %v1610
        %v1612 = vpop.f32.mrb[0].mxu0
        %v1613 = vpop.f32.mrb[0].mxu0
        %v1614 = vpop.f32.mrb[0].mxu0
        %1615 = vdwg.mxu0
        %v1617 = vsel %vm1228, %v1476, 0
        %v1620 = vsel %vm1480, %v1221, 0
        %1622 = vmatprep.subr.bf16.mxu0 0
        %1623 = vmatpush1.bf16.msra.mxu0 %v1620
        %1624 = vmatprep.subr.bf16.mxu0 0
        %1625 = vmatpush1.bf16.msra.mxu0 0
        %1626 = vmatprep.subr.bf16.mxu0 0
        %1627 = vmatpush1.bf16.msra.mxu0 0
        %1628 = vmatprep.subr.bf16.mxu0 0
        %1629 = vmatpush1.bf16.msra.mxu0 0
        %1630 = vmatprep.subr.bf16.mxu0 0
        %1631 = vmatpush1.bf16.msra.mxu0 0
        %1632 = vmatprep.subr.bf16.mxu0 0
        %1633 = vmatpush1.bf16.msra.mxu0 0
        %1634 = vmatprep.subr.bf16.mxu0 0
        %1635 = vmatpush1.bf16.msra.mxu0 0
        %1636 = vmatprep.subr.bf16.mxu0 0
        %1637 = vmatpush1.bf16.msra.mxu0 0
        %1638 = vmatprep.subr.bf16.mxu0 0
        %1639 = vmatpush1.bf16.msra.mxu0 0
        %1640 = vmatprep.subr.bf16.mxu0 0
        %1641 = vmatpush1.bf16.msra.mxu0 0
        %1642 = vmatprep.subr.bf16.mxu0 0
        %1643 = vmatpush1.bf16.msra.mxu0 0
        %1644 = vmatprep.subr.bf16.mxu0 0
        %1645 = vmatpush1.bf16.msra.mxu0 0
        %1646 = vmatprep.subr.bf16.mxu0 0
        %1647 = vmatpush1.bf16.msra.mxu0 0
        %1648 = vmatprep.subr.bf16.mxu0 0
        %1649 = vmatpush1.bf16.msra.mxu0 0
        %1650 = vmatprep.subr.bf16.mxu0 0
        %1651 = vmatpush1.bf16.msra.mxu0 0
        %1652 = vmatprep.subr.bf16.mxu0 0
        %1653 = vmatpush1.bf16.msra.mxu0 0
        %1654 = vmatprep.mubr.bf16.mxu0 0
        %1655 = vmatmul.mubr.bf16.gmra.mrb[0].mxu0 %v1617
        %v1656 = vpop.f32.mrb[0].mxu0
        %v1657 = vadd.f32 0.0, %v1656
        %v1658 = vpop.f32.mrb[0].mxu0
        %v1659 = vpop.f32.mrb[0].mxu0
        %v1660 = vpop.f32.mrb[0].mxu0
        %1661 = vdwg.mxu0
        %v1662 = vadd.f32 %v1453, %v1519
        %v1663 = vadd.f32 %v1454, %v1565
        %v1664 = vadd.f32 %v1455, %v1611
        %v1665 = vadd.f32 %v1456, %v1657
        %v1666 = vrcp.pop %v1469
        %v1667 = vrcp.pop %v1470
        %v1668 = vrcp.pop %v1471
        %v1669 = vrcp.pop %v1472
        %v1670 = vmul.f32 %v1662, %v1666
        %v1671 = vmul.f32 %v1663, %v1667
        %v1672 = vmul.f32 %v1664, %v1668
        %v1673 = vmul.f32 %v1665, %v1669
        %v1674 = vcombine.low %v1670, %v1672
        %v1675 = vcombine.high %v1670, %v1672
        %v1677 = vunpack.c.l.s4 1983009808
        %v1678 = vunpack.c.0.s8 %v1677
        %v1679 = vlaneseq
        %v1680 = vshrl.u32 %v1679, 7
        %v1681 = vsub.s32 %v1678, %v1680
        %v1682 = vrot.slane %v1674, %v1681
        %v1684 = vunpack.c.l.s4 1983009808
        %v1685 = vunpack.c.0.s8 %v1684
        %v1686 = vlaneseq
        %v1687 = vshrl.u32 %v1686, 7
        %v1688 = vsub.s32 %v1685, %v1687
        %v1689 = vrot.slane %v1675, %v1688
        %v1690 = vcombine.low %v1671, %v1673
        %v1691 = vcombine.high %v1671, %v1673
        %v1693 = vunpack.c.l.s4 1983009808
        %v1694 = vunpack.c.0.s8 %v1693
        %v1695 = vlaneseq
        %v1696 = vshrl.u32 %v1695, 7
        %v1697 = vsub.s32 %v1694, %v1696
        %v1698 = vrot.slane %v1690, %v1697
        %v1700 = vunpack.c.l.s4 1983009808
        %v1701 = vunpack.c.0.s8 %v1700
        %v1702 = vlaneseq
        %v1703 = vshrl.u32 %v1702, 7
        %v1704 = vsub.s32 %v1701, %v1703
        %v1705 = vrot.slane %v1691, %v1704
        %v1706 = vcombine.low %v1682, %v1698
        %v1707 = vcombine.high %v1682, %v1698
        %v1709 = vunpack.c.l.s4 1934713408
        %v1710 = vunpack.c.0.s8 %v1709
        %v1711 = vlaneseq
        %v1712 = vshrl.u32 %v1711, 7
        %v1713 = vsub.s32 %v1710, %v1712
        %v1714 = vrot.slane %v1706, %v1713
        %v1716 = vunpack.c.l.s4 1934713408
        %v1717 = vunpack.c.0.s8 %v1716
        %v1718 = vlaneseq
        %v1719 = vshrl.u32 %v1718, 7
        %v1720 = vsub.s32 %v1717, %v1719
        %v1721 = vrot.slane %v1707, %v1720
        %v1722 = vcombine.low %v1689, %v1705
        %v1723 = vcombine.high %v1689, %v1705
        %v1725 = vunpack.c.l.s4 1934713408
        %v1726 = vunpack.c.0.s8 %v1725
        %v1727 = vlaneseq
        %v1728 = vshrl.u32 %v1727, 7
        %v1729 = vsub.s32 %v1726, %v1728
        %v1730 = vrot.slane %v1722, %v1729
        %v1732 = vunpack.c.l.s4 1934713408
        %v1733 = vunpack.c.0.s8 %v1732
        %v1734 = vlaneseq
        %v1735 = vshrl.u32 %v1734, 7
        %v1736 = vsub.s32 %v1733, %v1735
        %v1737 = vrot.slane %v1723, %v1736
        %v1738 = vcombine.high %v1714, 0.0
        %v1739 = vcombine.high %v1721, 0.0
        %v1740 = vcombine.high %v1730, 0.0
        %v1741 = vcombine.high %v1737, 0.0
        %v1742 = vcombine.low %v1714, %v1721
        %v1744 = vunpack.c.l.s4 1983009808
        %v1745 = vunpack.c.0.s8 %v1744
        %v1746 = vlaneseq
        %v1747 = vshrl.u32 %v1746, 7
        %v1748 = vsub.s32 %v1745, %v1747
        %v1749 = vrot.slane %v1742, %v1748
        %v1750 = vcombine.low %v1738, %v1739
        %v1752 = vunpack.c.l.s4 1983009808
        %v1753 = vunpack.c.0.s8 %v1752
        %v1754 = vlaneseq
        %v1755 = vshrl.u32 %v1754, 7
        %v1756 = vsub.s32 %v1753, %v1755
        %v1757 = vrot.slane %v1750, %v1756
        %v1758 = vcombine.low %v1730, %v1737
        %v1760 = vunpack.c.l.s4 1983009808
        %v1761 = vunpack.c.0.s8 %v1760
        %v1762 = vlaneseq
        %v1763 = vshrl.u32 %v1762, 7
        %v1764 = vsub.s32 %v1761, %v1763
        %v1765 = vrot.slane %v1758, %v1764
        %v1766 = vcombine.low %v1740, %v1741
        %v1768 = vunpack.c.l.s4 1983009808
        %v1769 = vunpack.c.0.s8 %v1768
        %v1770 = vlaneseq
        %v1771 = vshrl.u32 %v1770, 7
        %v1772 = vsub.s32 %v1769, %v1771
        %v1773 = vrot.slane %v1766, %v1772
        %v1774 = vcombine.low %v1749, %v1757
        %v1775 = vcombine.high %v1749, %v1757
        %v1777 = vunpack.c.l.s4 1934713408
        %v1778 = vunpack.c.0.s8 %v1777
        %v1779 = vlaneseq
        %v1780 = vshrl.u32 %v1779, 7
        %v1781 = vsub.s32 %v1778, %v1780
        %v1782 = vrot.slane %v1774, %v1781
        %v1784 = vunpack.c.l.s4 1934713408
        %v1785 = vunpack.c.0.s8 %v1784
        %v1786 = vlaneseq
        %v1787 = vshrl.u32 %v1786, 7
        %v1788 = vsub.s32 %v1785, %v1787
        %v1789 = vrot.slane %v1775, %v1788
        %v1790 = vcombine.low %v1765, %v1773
        %v1791 = vcombine.high %v1765, %v1773
        %v1793 = vunpack.c.l.s4 1934713408
        %v1794 = vunpack.c.0.s8 %v1793
        %v1795 = vlaneseq
        %v1796 = vshrl.u32 %v1795, 7
        %v1797 = vsub.s32 %v1794, %v1796
        %v1798 = vrot.slane %v1790, %v1797
        %v1800 = vunpack.c.l.s4 1934713408
        %v1801 = vunpack.c.0.s8 %v1800
        %v1802 = vlaneseq
        %v1803 = vshrl.u32 %v1802, 7
        %v1804 = vsub.s32 %v1801, %v1803
        %v1805 = vrot.slane %v1791, %v1804
        %v1806 = vcombine.low %v1782, %v1798
        %v1807 = vcombine.high %v1782, %v1798
        %v1808 = vcombine.low %v1789, %v1805
        %v1809 = vcombine.high %v1789, %v1805
        %1811 = vrot.lane.b32.xlu0 %v1807, 8
        %v1812 = vpop.permute.xlu0 %1811
        %1815 = vrot.lane.b32.xlu0 %v1808, 16
        %v1816 = vpop.permute.xlu0 %1815
        %1819 = vrot.lane.b32.xlu0 %v1809, 24
        %v1820 = vpop.permute.xlu0 %1819
        %v1822 = vsel %vm1228, %v1806, %v1812
        %vm1823 = vcmask 130048
        %v1824 = vsel %vm1823, %v1822, %v1816
        %vm1825 = vcmask 195584
        %v1826 = vsel %vm1825, %v1824, %v1820
        %v1827 = vpack.c.bf16 %v1826, %v1826
        %v1828 = vld [vmem:[%s560] sm:$0xf]
        %v1829 = vld [vmem:[%s560 + $0x4] sm:$0xf]
        %v1830 = vld [vmem:[%s560 + $0x8] sm:$0xf]
        %v1831 = vld [vmem:[%s560 + $0xc] sm:$0xf]
        %v1832 = vlaneseq
        %v1833 = vshrl.u32 %v1832, 7
        %v1834 = vsub.s32 3, %v1833
        %v1835 = vrot.slane %v584, %v1834
        %v1840 = vunpack.c.l.b16 %v1828
        %v1841 = vunpack.c.l.b16 %v1829
        %v1842 = vunpack.c.l.b16 %v1830
        %v1843 = vunpack.c.l.b16 %v1831
        %v1844 = vpack.c.b16 %v1841, %v1840
        %v1845 = vpack.c.b16 %v1843, %v1842
        %v1849 = vsel %vm607, %v1827, 0
        %1851 = vmatprep.subr.bf16.mxu0 0
        %1852 = vmatpush1.bf16.msra.mxu0 %v1844
        %1853 = vmatprep.subr.bf16.mxu0 0
        %1854 = vmatpush1.bf16.msra.mxu0 %v1845
        %1855 = vmatprep.subr.bf16.mxu0 0
        %1856 = vmatpush1.bf16.msra.mxu0 0
        %1857 = vmatprep.subr.bf16.mxu0 0
        %1858 = vmatpush1.bf16.msra.mxu0 0
        %1859 = vmatprep.subr.bf16.mxu0 0
        %1860 = vmatpush1.bf16.msra.mxu0 0
        %1861 = vmatprep.subr.bf16.mxu0 0
        %1862 = vmatpush1.bf16.msra.mxu0 0
        %1863 = vmatprep.subr.bf16.mxu0 0
        %1864 = vmatpush1.bf16.msra.mxu0 0
        %1865 = vmatprep.subr.bf16.mxu0 0
        %1866 = vmatpush1.bf16.msra.mxu0 0
        %1867 = vmatprep.subr.bf16.mxu0 0
        %1868 = vmatpush1.bf16.msra.mxu0 0
        %1869 = vmatprep.subr.bf16.mxu0 0
        %1870 = vmatpush1.bf16.msra.mxu0 0
        %1871 = vmatprep.subr.bf16.mxu0 0
        %1872 = vmatpush1.bf16.msra.mxu0 0
        %1873 = vmatprep.subr.bf16.mxu0 0
        %1874 = vmatpush1.bf16.msra.mxu0 0
        %1875 = vmatprep.subr.bf16.mxu0 0
        %1876 = vmatpush1.bf16.msra.mxu0 0
        %1877 = vmatprep.subr.bf16.mxu0 0
        %1878 = vmatpush1.bf16.msra.mxu0 0
        %1879 = vmatprep.subr.bf16.mxu0 0
        %1880 = vmatpush1.bf16.msra.mxu0 0
        %1881 = vmatprep.subr.bf16.mxu0 0
        %1882 = vmatpush1.bf16.msra.mxu0 0
        %1883 = vmatprep.mubr.bf16.mxu0 0
        %1884 = vmatmul.mubr.bf16.gmra.mrb[0].mxu0 %v1849
        %v1885 = vpop.f32.mrb[0].mxu0
        %v1886 = vadd.f32 %v1835, %v1885
        %v1887 = vpop.f32.mrb[0].mxu0
        %v1888 = vpop.f32.mrb[0].mxu0
        %v1889 = vpop.f32.mrb[0].mxu0
        %1890 = vdwg.mxu0
        %v1891 = vadd.f32 %v582, %v1886
        %v1892 = vsel %vm607, %v1891, 0.0
        %1893 = vadd.xlane.f32.xlu0 %v1892
        %v1894 = vpop.xlane.xlu0 %1893
        %v1895 = vrcp.pop 32.0
        %v1896 = vmul.f32 %v1894, %v1895
        %v1897 = vsub.f32 %v1891, %v1896
        %v1898 = vmul.f32 %v1897, %v1897
        %v1899 = vsel %vm607, %v1898, 0.0
        %1900 = vadd.xlane.f32.xlu0 %v1899
        %v1901 = vpop.xlane.xlu0 %1900
        %v1902 = vmul.f32 %v1901, %v1895
        %v1903 = vadd.f32 %v1902, 1e-05
        %v1904 = vrsqrt.pop %v1903
        %v1905 = vmul.f32 %v1897, %v1904
        %v1906 = vlaneseq
        %v1907 = vshrl.u32 %v1906, 7
        %v1908 = vsub.s32 4, %v1907
        %v1909 = vrot.slane %v584, %v1908
        %v1910 = vmul.f32 %v1905, %v1909
        %v1911 = vlaneseq
        %v1912 = vshrl.u32 %v1911, 7
        %v1913 = vsub.s32 5, %v1912
        %v1914 = vrot.slane %v584, %v1913
        %v1915 = vadd.f32 %v1910, %v1914
        %v1916 = vpack.c.bf16 %v1915, %v1915
        %v1917 = vld [vmem:[%s463] sm:$0xf]
        %v1918 = vld [vmem:[%s463 + $0x4] sm:$0xf]
        %v1919 = vld [vmem:[%s463 + $0x8] sm:$0xf]
        %v1920 = vld [vmem:[%s463 + $0xc] sm:$0xf]
        %v1921 = vlaneseq
        %v1922 = vshrl.u32 %v1921, 7
        %v1923 = vsub.s32 6, %v1922
        %v1924 = vrot.slane %v584, %v1923
        %v1929 = vunpack.c.l.b16 %v1917
        %v1930 = vunpack.c.l.b16 %v1918
        %v1931 = vunpack.c.l.b16 %v1919
        %v1932 = vunpack.c.l.b16 %v1920
        %v1933 = vpack.c.b16 %v1930, %v1929
        %v1934 = vpack.c.b16 %v1932, %v1931
        %v1938 = vsel %vm607, %v1916, 0
        %1940 = vmatprep.subr.bf16.mxu0 0
        %1941 = vmatpush1.bf16.msra.mxu0 %v1933
        %1942 = vmatprep.subr.bf16.mxu0 0
        %1943 = vmatpush1.bf16.msra.mxu0 %v1934
        %1944 = vmatprep.subr.bf16.mxu0 0
        %1945 = vmatpush1.bf16.msra.mxu0 0
        %1946 = vmatprep.subr.bf16.mxu0 0
        %1947 = vmatpush1.bf16.msra.mxu0 0
        %1948 = vmatprep.subr.bf16.mxu0 0
        %1949 = vmatpush1.bf16.msra.mxu0 0
        %1950 = vmatprep.subr.bf16.mxu0 0
        %1951 = vmatpush1.bf16.msra.mxu0 0
        %1952 = vmatprep.subr.bf16.mxu0 0
        %1953 = vmatpush1.bf16.msra.mxu0 0
        %1954 = vmatprep.subr.bf16.mxu0 0
        %1955 = vmatpush1.bf16.msra.mxu0 0
        %1956 = vmatprep.subr.bf16.mxu0 0
        %1957 = vmatpush1.bf16.msra.mxu0 0
        %1958 = vmatprep.subr.bf16.mxu0 0
        %1959 = vmatpush1.bf16.msra.mxu0 0
        %1960 = vmatprep.subr.bf16.mxu0 0
        %1961 = vmatpush1.bf16.msra.mxu0 0
        %1962 = vmatprep.subr.bf16.mxu0 0
        %1963 = vmatpush1.bf16.msra.mxu0 0
        %1964 = vmatprep.subr.bf16.mxu0 0
        %1965 = vmatpush1.bf16.msra.mxu0 0
        %1966 = vmatprep.subr.bf16.mxu0 0
        %1967 = vmatpush1.bf16.msra.mxu0 0
        %1968 = vmatprep.subr.bf16.mxu0 0
        %1969 = vmatpush1.bf16.msra.mxu0 0
        %1970 = vmatprep.subr.bf16.mxu0 0
        %1971 = vmatpush1.bf16.msra.mxu0 0
        %1972 = vmatprep.mubr.bf16.mxu0 0
        %1973 = vmatmul.mubr.bf16.gmra.mrb[0].mxu0 %v1938
        %v1974 = vpop.f32.mrb[0].mxu0
        %v1975 = vadd.f32 %v1924, %v1974
        %v1976 = vpop.f32.mrb[0].mxu0
        %v1977 = vpop.f32.mrb[0].mxu0
        %v1978 = vpop.f32.mrb[0].mxu0
        %1979 = vdwg.mxu0
        %v1980 = vmax.f32 %v1975, 0.0
        %v1981 = vpack.c.bf16 %v1980, %v1980
        %v1982 = vld [vmem:[%s565] sm:$0xf]
        %v1983 = vld [vmem:[%s565 + $0x4] sm:$0xf]
        %v1984 = vld [vmem:[%s565 + $0x8] sm:$0xf]
        %v1985 = vld [vmem:[%s565 + $0xc] sm:$0xf]
        %v1986 = vld [vmem:[%s565 + $0x10] sm:$0xf]
        %v1987 = vld [vmem:[%s565 + $0x14] sm:$0xf]
        %v1988 = vld [vmem:[%s565 + $0x18] sm:$0xf]
        %v1989 = vld [vmem:[%s565 + $0x1c] sm:$0xf]
        %v1990 = vlaneseq
        %v1991 = vshrl.u32 %v1990, 7
        %v1992 = vsub.s32 7, %v1991
        %v1993 = vrot.slane %v584, %v1992
        %v2002 = vunpack.c.l.b16 %v1982
        %v2003 = vunpack.c.l.b16 %v1983
        %v2004 = vunpack.c.l.b16 %v1984
        %v2005 = vunpack.c.l.b16 %v1985
        %v2006 = vunpack.c.l.b16 %v1986
        %v2007 = vunpack.c.l.b16 %v1987
        %v2008 = vunpack.c.l.b16 %v1988
        %v2009 = vunpack.c.l.b16 %v1989
        %v2010 = vpack.c.b16 %v2003, %v2002
        %v2011 = vpack.c.b16 %v2005, %v2004
        %v2012 = vpack.c.b16 %v2007, %v2006
        %v2013 = vpack.c.b16 %v2009, %v2008
        %vm2018 = vcmask 523264
        %v2020 = vsel %vm2018, %v1981, 0
        %2022 = vmatprep.subr.bf16.mxu0 0
        %2023 = vmatpush1.bf16.msra.mxu0 %v2010
        %2024 = vmatprep.subr.bf16.mxu0 0
        %2025 = vmatpush1.bf16.msra.mxu0 %v2011
        %2026 = vmatprep.subr.bf16.mxu0 0
        %2027 = vmatpush1.bf16.msra.mxu0 %v2012
        %2028 = vmatprep.subr.bf16.mxu0 0
        %2029 = vmatpush1.bf16.msra.mxu0 %v2013
        %2030 = vmatprep.subr.bf16.mxu0 0
        %2031 = vmatpush1.bf16.msra.mxu0 0
        %2032 = vmatprep.subr.bf16.mxu0 0
        %2033 = vmatpush1.bf16.msra.mxu0 0
        %2034 = vmatprep.subr.bf16.mxu0 0
        %2035 = vmatpush1.bf16.msra.mxu0 0
        %2036 = vmatprep.subr.bf16.mxu0 0
        %2037 = vmatpush1.bf16.msra.mxu0 0
        %2038 = vmatprep.subr.bf16.mxu0 0
        %2039 = vmatpush1.bf16.msra.mxu0 0
        %2040 = vmatprep.subr.bf16.mxu0 0
        %2041 = vmatpush1.bf16.msra.mxu0 0
        %2042 = vmatprep.subr.bf16.mxu0 0
        %2043 = vmatpush1.bf16.msra.mxu0 0
        %2044 = vmatprep.subr.bf16.mxu0 0
        %2045 = vmatpush1.bf16.msra.mxu0 0
        %2046 = vmatprep.subr.bf16.mxu0 0
        %2047 = vmatpush1.bf16.msra.mxu0 0
        %2048 = vmatprep.subr.bf16.mxu0 0
        %2049 = vmatpush1.bf16.msra.mxu0 0
        %2050 = vmatprep.subr.bf16.mxu0 0
        %2051 = vmatpush1.bf16.msra.mxu0 0
        %2052 = vmatprep.subr.bf16.mxu0 0
        %2053 = vmatpush1.bf16.msra.mxu0 0
        %2054 = vmatprep.mubr.bf16.mxu0 0
        %2055 = vmatmul.mubr.bf16.gmra.mrb[0].mxu0 %v2020
        %v2056 = vpop.f32.mrb[0].mxu0
        %v2057 = vadd.f32 %v1993, %v2056
        %v2058 = vpop.f32.mrb[0].mxu0
        %v2059 = vpop.f32.mrb[0].mxu0
        %v2060 = vpop.f32.mrb[0].mxu0
        %2061 = vdwg.mxu0
        %v2062 = vadd.f32 %v1915, %v2057
        %v2063 = vsel %vm607, %v2062, 0.0
        %2064 = vadd.xlane.f32.xlu0 %v2063
        %v2065 = vpop.xlane.xlu0 %2064
        %v2066 = vmul.f32 %v2065, %v1895
        %v2067 = vsub.f32 %v2062, %v2066
        %v2068 = vmul.f32 %v2067, %v2067
        %v2069 = vsel %vm607, %v2068, 0.0
        %2070 = vadd.xlane.f32.xlu0 %v2069
        %v2071 = vpop.xlane.xlu0 %2070
        %v2072 = vmul.f32 %v2071, %v1895
        %v2073 = vadd.f32 %v2072, 1e-05
        %v2074 = vrsqrt.pop %v2073
        %v2075 = vmul.f32 %v2067, %v2074
        %v2076 = vlaneseq
        %v2077 = vshrl.u32 %v2076, 7
        %v2078 = vsub.s32 0, %v2077
        %v2079 = vrot.slane %v585, %v2078
        %v2080 = vmul.f32 %v2075, %v2079
        %v2081 = vlaneseq
        %v2082 = vshrl.u32 %v2081, 7
        %v2083 = vsub.s32 1, %v2082
        %v2084 = vrot.slane %v585, %v2083
        %v2085 = vadd.f32 %v2080, %v2084
        %2086 = vst.msk [vmem:[#allocation2] sm:$0xff] %vm607, %v2085
        %p2087 = scmp.eq.s32.totalorder %s33, 1
        // Predicated region
        $region77: #{tpu_custom_call.1} parent=59 // pred_check
          %p2088 = pneg %p2087
        $region78: #{tpu_custom_call.1} parent=59 // pred_check_branch
          %2090 = sbr.rel (%p2088) target = $region80
        $region79: #{tpu_custom_call.1} parent=59 // pred_region
          %2091 = vst.msk [vmem:[%s537] sm:$0xff] %vm607, %v2085
        $region80: #{tpu_custom_call.1} parent=59 // pred_fallthru
          _
        %s2092 = sand.u32 %s303, 1
        %s2093 = scalar_lea.sflag [#allocation5], %s2092
        %s2094 = sand.u32 %s303, 1
        %s2095 = smul.addr %s2094, 8
        %s2096 = scalar_lea.vmem [#allocation9], %s2095
        // Predicated region
        $region81: #{tpu_custom_call.1} parent=59 // pred_check
          %p2097 = pneg %p313
        $region82: #{tpu_custom_call.1} parent=59 // pred_check_branch
          %2099 = sbr.rel (%p2097) target = $region84
        $region83: #{tpu_custom_call.1} parent=59 // pred_region
          %s2101 = ssub.s32 128, 128
          %2102 = vsyncadd %s2093, %s2101
          %s2103 = smul.addr %s32, 128
          %s2104 = scalar_lea.hbm %s10, %s2103
          %s2106 = sshll.u32 %s2096, 4
          %s2107 = int_to_ptr.vmem [resolvable:$true] %s2106
          %2109 = dma.vmem_to_hbm [thread:$0]  %s2107, 128, %s2104, %s2093
        $region84: #{tpu_custom_call.1} parent=59 // pred_fallthru
          _
      $region60: #{tpu_custom_call.1} parent=5 // pred_fallthru
        _
      %p2110 = scmp.le.s32.totalorder 2, %s23
      // Predicated region
      $region85: #{tpu_custom_call.1} parent=5 // pred_check
        %p2111 = pneg %p2110
      $region86: #{tpu_custom_call.1} parent=5 // pred_check_branch
        %2113 = sbr.rel (%p2111) target = $region88
      $region87: #{tpu_custom_call.1} parent=5 // pred_region
        %s2114 = ssub.s32 %s23, 2
        // Predicated region
        $region89: #{tpu_custom_call.1} parent=87 // pred_check
          %p2115 = pneg %p319
        $region90: #{tpu_custom_call.1} parent=87 // pred_check_branch
          %2117 = sbr.rel (%p2115) target = $region92
        $region91: #{tpu_custom_call.1} parent=87 // pred_region
          %s2118 = sand.u32 %s304, 1
          %s2119 = scalar_lea.sflag [#allocation5], %s2118
          %s2120 = sand.u32 %s304, 1
          %s2121 = smul.addr %s2120, 8
          %s2122 = scalar_lea.vmem [#allocation9], %s2121
          %2123 = dma.done %s2119, 128
        $region92: #{tpu_custom_call.1} parent=87 // pred_fallthru
          _
      $region88: #{tpu_custom_call.1} parent=5 // pred_fallthru
        _
    $region6: #{tpu_custom_call.1} parent=1 // loop_footer
      %s27 = sadd.s32 1, %s23
    $region7: #{tpu_custom_call.1} parent=1 // loop_footer_branch
      %22 = sbr.rel target = $region3
    $region8: #{tpu_custom_call.1} parent=1 // loop_exit
      _
    %2124 = vsyncpa [#allocation4], 1
    %s2125 = scalar_lea.sflag [#allocation4], 1
    %2126 = vsyncpa %s2125, 1
    %2127 = vsyncpa [#allocation7], 1
    %2128 = vsyncpa [#allocation5], 1
    %s2129 = scalar_lea.sflag [#allocation5], 1
    %2130 = vsyncpa %s2129, 1

</llo_original>
